<compile_context>
chip_gen: v7x
topology: tpu7x:2x2x1
jax: 0.10.0
libtpu: 0.0.40
codegen_flags: <defaults>
</compile_context>

<pallas_src>
import functools

import jax
import jax.numpy as jnp
from jax.experimental import pallas as pl
from jax.experimental.pallas import tpu as pltpu


LATENT_DIM = 32
OUT_SHAPE = 64
OUT_PAD = 128          # lane-dense final layer; real 64 columns sliced outside
NUM_CLASSES = 4
CLASS_PAD = 8          # one-hot / embedding-table rows padded to the sublane quantum
H1, H2, H3 = 128, 256, 512
BN_EPS = 1e-5
LEAKY_SLOPE = 0.2
BATCH = 128            # keep the MXU sublanes fed in the demo run


def generator_kernel(
    noise_ref, onehot_ref, emb_tbl_ref,
    w1_ref, b1_ref, g1_ref, be1_ref,
    w2_ref, b2_ref, g2_ref, be2_ref,
    b3_ref, g3_ref, be3_ref,
    b4_ref,
    w3_hbm, w4_hbm,
    out_ref,
    w3_vmem, w4_vmem, dma_sem,
    *, n_real,
):
    bp = noise_ref.shape[0]
    inv_n = 1.0 / float(n_real)

    # Kick off the layer-3/4 weight DMAs immediately so their HBM latency hides
    # behind the layer-1/2 compute (all other params arrive in the prologue).
    w3_copy = pltpu.make_async_copy(w3_hbm, w3_vmem, dma_sem.at[0])
    w4_copy = pltpu.make_async_copy(w4_hbm, w4_vmem, dma_sem.at[1])
    w3_copy.start()
    w4_copy.start()

    if n_real == bp:
        mask = None
    else:
        rows = jax.lax.broadcasted_iota(jnp.int32, (bp, 1), 0)
        mask = rows < n_real                         # [Bp, 1]

    # Label-embedding gather as a tiny one-hot matmul (MXU is idle here); one-hot
    # entries are exact in bf16.
    emb = jnp.dot(onehot_ref[...], emb_tbl_ref[...].astype(jnp.bfloat16),
                  preferred_element_type=jnp.float32)            # [Bp, L]
    x = noise_ref[...] * emb                                      # gen_input

    def bn_train(z, gamma, beta):
        # One-pass batch stats over the REAL rows only; folded scale/shift epilogue.
        zm = z if mask is None else jnp.where(mask, z, 0.0)
        mean = jnp.sum(zm, axis=0, keepdims=True) * inv_n
        ex2 = jnp.sum(zm * zm, axis=0, keepdims=True) * inv_n
        var = jnp.maximum(ex2 - mean * mean, 0.0)    # clamp f32 cancellation
        scale = gamma * jax.lax.rsqrt(var + BN_EPS)  # [1, N] EUP math stays tiny
        shift = beta - mean * scale
        return z * scale + shift

    def block(h, w, bias, gamma, beta):
        z = jnp.dot(h.astype(jnp.bfloat16), w,
                    preferred_element_type=jnp.float32) + bias
        z = jnp.where(z > 0, z, LEAKY_SLOPE * z)                  # LeakyReLU(0.2)
        # bf16 inter-layer activation halves VMEM traffic / vreg pressure; identical
        # numerics to casting right before the next dot.
        return bn_train(z, gamma, beta).astype(jnp.bfloat16)

    h = block(x, w1_ref[...], b1_ref[...], g1_ref[...], be1_ref[...])
    h = block(h, w2_ref[...], b2_ref[...], g2_ref[...], be2_ref[...])
    w3_copy.wait()
    h = block(h, w3_vmem[...], b3_ref[...], g3_ref[...], be3_ref[...])
    w4_copy.wait()
    z = jnp.dot(h, w4_vmem[...], preferred_element_type=jnp.float32) + b4_ref[...]
    out_ref[...] = jnp.tanh(z)


@jax.jit
def generator_forward(noise, labels, params):
    """noise: [B, latent] f32, labels: [B] int, params: dict of weights."""
    b = noise.shape[0]
    bp = max(16, ((b + 15) // 16) * 16)      # bf16 packs 16 rows / vreg on sublanes
    if bp != b:
        noise = jnp.pad(noise, ((0, bp - b), (0, 0)))
        labels = jnp.pad(labels, ((0, bp - b),))
    onehot = (labels.astype(jnp.int32)[:, None]
              == jnp.arange(CLASS_PAD, dtype=jnp.int32)[None, :]).astype(jnp.bfloat16)

    vmem = pl.BlockSpec(memory_space=pltpu.MemorySpace.VMEM)
    hbm = pl.BlockSpec(memory_space=pl.ANY)
    operands = (
        noise, onehot, params["emb_table"],
        params["w1"], params["b1"], params["g1"], params["be1"],
        params["w2"], params["b2"], params["g2"], params["be2"],
        params["b3"], params["g3"], params["be3"],
        params["b4"],
        params["w3"], params["w4"],          # manually DMA'd inside the kernel
    )
    in_specs = [vmem] * (len(operands) - 2) + [hbm, hbm]
    out = pl.pallas_call(
        functools.partial(generator_kernel, n_real=b),
        out_shape=jax.ShapeDtypeStruct((bp, OUT_PAD), jnp.float32),
        in_specs=in_specs,
        out_specs=vmem,
        scratch_shapes=[
            pltpu.VMEM((H2, H3), jnp.bfloat16),       # w3 landing buffer
            pltpu.VMEM((H3, OUT_PAD), jnp.bfloat16),  # w4 landing buffer
            pltpu.SemaphoreType.DMA((2,)),
        ],
    )(*operands)
    return out[:b, :OUT_SHAPE]


def init_params(key):
    """PyTorch-style init: Linear U(-1/sqrt(fan_in), ..), Embedding N(0,1), BN gamma=1
    beta=0.  Weights stored bf16 ([in, out]); biases / BN params / emb table f32."""
    dims = [LATENT_DIM, H1, H2, H3, OUT_SHAPE]
    params = {}
    key, ek = jax.random.split(key)
    tbl = jax.random.normal(ek, (NUM_CLASSES, LATENT_DIM), jnp.float32)
    params["emb_table"] = jnp.pad(tbl, ((0, CLASS_PAD - NUM_CLASSES), (0, 0)))
    for i in range(4):
        fan_in, fan_out = dims[i], dims[i + 1]
        key, wk, bk = jax.random.split(key, 3)
        bound = 1.0 / (fan_in ** 0.5)
        w = jax.random.uniform(wk, (fan_in, fan_out), jnp.float32, -bound, bound)
        bvec = jax.random.uniform(bk, (1, fan_out), jnp.float32, -bound, bound)
        if i == 3:  # lane-pad final layer to 128 output features (zeros)
            w = jnp.pad(w, ((0, 0), (0, OUT_PAD - fan_out)))
            bvec = jnp.pad(bvec, ((0, 0), (0, OUT_PAD - fan_out)))
        params[f"w{i+1}"] = w.astype(jnp.bfloat16)
        params[f"b{i+1}"] = bvec
        if i < 3:
            params[f"g{i+1}"] = jnp.ones((1, fan_out), jnp.float32)
            params[f"be{i+1}"] = jnp.zeros((1, fan_out), jnp.float32)
    return params


def reference_forward(noise, labels, params):
    """Pure-JAX f32 reference (same parameter values, weights upcast to f32)."""
    emb = params["emb_table"][labels]
    h = noise * emb

    def bn(x, g, be):
        mean = jnp.mean(x, axis=0, keepdims=True)
        var = jnp.mean((x - mean) ** 2, axis=0, keepdims=True)
        return (x - mean) * jax.lax.rsqrt(var + BN_EPS) * g + be

    for i in range(1, 4):
        h = h @ params[f"w{i}"].astype(jnp.float32) + params[f"b{i}"]
        h = jnp.where(h > 0, h, LEAKY_SLOPE * h)
        h = bn(h, params[f"g{i}"], params[f"be{i}"])
    h = h @ params["w4"].astype(jnp.float32) + params["b4"]
    return jnp.tanh(h)[:, :OUT_SHAPE]


if __name__ == "__main__":
    key = jax.random.PRNGKey(0)
    key, nk, lk, pk = jax.random.split(key, 4)
    params = init_params(pk)

    noise = jax.random.normal(nk, (BATCH, LATENT_DIM), jnp.float32)
    labels = jax.random.randint(lk, (BATCH,), 0, NUM_CLASSES, jnp.int32)

    # Full batch (no padding path; BN mask elided at trace time).
    out = jax.block_until_ready(generator_forward(noise, labels, params))
    ref = reference_forward(noise, labels, params)
    assert out.shape == (BATCH, OUT_SHAPE)
    assert bool(jnp.all(jnp.isfinite(out)))
    assert bool(jnp.all(jnp.abs(out) <= 1.0 + 1e-6))        # tanh range
    assert float(jnp.max(jnp.abs(out - ref))) < 0.15        # bf16-matmul tolerance

    # Small odd batch: exercises padding + masked full-batch BatchNorm stats.
    small_b = 6
    out_s = jax.block_until_ready(
        generator_forward(noise[:small_b], labels[:small_b], params))
    ref_s = reference_forward(noise[:small_b], labels[:small_b], params)
    assert out_s.shape == (small_b, OUT_SHAPE)
    assert bool(jnp.all(jnp.isfinite(out_s)))
    assert float(jnp.max(jnp.abs(out_s - ref_s))) < 0.15

    print("KERNEL_OK")
</pallas_src>

<mosaic_0001>
module attributes {stable_mosaic.version = 11 : i64} {
  func.func @generator_kernel(%arg0: memref<128x32xf32, #tpu.memory_space<vmem>>, %arg1: memref<128x8xbf16, #tpu.memory_space<vmem>>, %arg2: memref<8x32xf32, #tpu.memory_space<vmem>>, %arg3: memref<32x128xbf16, #tpu.memory_space<vmem>>, %arg4: memref<1x128xf32, #tpu.memory_space<vmem>>, %arg5: memref<1x128xf32, #tpu.memory_space<vmem>>, %arg6: memref<1x128xf32, #tpu.memory_space<vmem>>, %arg7: memref<128x256xbf16, #tpu.memory_space<vmem>>, %arg8: memref<1x256xf32, #tpu.memory_space<vmem>>, %arg9: memref<1x256xf32, #tpu.memory_space<vmem>>, %arg10: memref<1x256xf32, #tpu.memory_space<vmem>>, %arg11: memref<1x512xf32, #tpu.memory_space<vmem>>, %arg12: memref<1x512xf32, #tpu.memory_space<vmem>>, %arg13: memref<1x512xf32, #tpu.memory_space<vmem>>, %arg14: memref<1x128xf32, #tpu.memory_space<vmem>>, %arg15: memref<256x512xbf16, #tpu.memory_space<any>>, %arg16: memref<512x128xbf16, #tpu.memory_space<any>>, %arg17: memref<128x128xf32, #tpu.memory_space<vmem>>, %arg18: memref<256x512xbf16, #tpu.memory_space<vmem>>, %arg19: memref<512x128xbf16, #tpu.memory_space<vmem>>, %arg20: memref<2x!tpu.dma_semaphore, #tpu.memory_space<semaphore_mem>>) attributes {dimension_semantics = [], scalar_prefetch = 0 : i64, scratch_operands = 3 : i64, tpu.core_type = #tpu.core_type<tc>} {
    %c0_i32 = arith.constant 0 : i32
    %0 = tpu.memref_slice %arg20[%c0_i32] : memref<2x!tpu.dma_semaphore, #tpu.memory_space<semaphore_mem>> -> memref<1x!tpu.dma_semaphore, #tpu.memory_space<semaphore_mem>>
    %1 = tpu.memref_squeeze %0 : memref<1x!tpu.dma_semaphore, #tpu.memory_space<semaphore_mem>> -> memref<!tpu.dma_semaphore, #tpu.memory_space<semaphore_mem>>
    tpu.enqueue_dma source(%arg15 : memref<256x512xbf16, #tpu.memory_space<any>>) target(%arg18 : memref<256x512xbf16, #tpu.memory_space<vmem>>) target_semaphore(%1 : memref<!tpu.dma_semaphore, #tpu.memory_space<semaphore_mem>>)
    %c1_i32 = arith.constant 1 : i32
    %2 = tpu.memref_slice %arg20[%c1_i32] : memref<2x!tpu.dma_semaphore, #tpu.memory_space<semaphore_mem>> -> memref<1x!tpu.dma_semaphore, #tpu.memory_space<semaphore_mem>>
    %3 = tpu.memref_squeeze %2 : memref<1x!tpu.dma_semaphore, #tpu.memory_space<semaphore_mem>> -> memref<!tpu.dma_semaphore, #tpu.memory_space<semaphore_mem>>
    tpu.enqueue_dma source(%arg16 : memref<512x128xbf16, #tpu.memory_space<any>>) target(%arg19 : memref<512x128xbf16, #tpu.memory_space<vmem>>) target_semaphore(%3 : memref<!tpu.dma_semaphore, #tpu.memory_space<semaphore_mem>>)
    %c0 = arith.constant 0 : index
    %c0_0 = arith.constant 0 : index
    %4 = vector.load %arg1[%c0, %c0_0] : memref<128x8xbf16, #tpu.memory_space<vmem>>, vector<128x8xbf16>
    %c0_1 = arith.constant 0 : index
    %c0_2 = arith.constant 0 : index
    %5 = vector.load %arg2[%c0_1, %c0_2] : memref<8x32xf32, #tpu.memory_space<vmem>>, vector<8x32xf32>
    %6 = arith.truncf %5 : vector<8x32xf32> to vector<8x32xbf16>
    %cst = arith.constant dense<0.000000e+00> : vector<128x32xf32>
    %7 = tpu.matmul %4, %6, %cst {dimension_numbers = #tpu.dot_dimension_numbers<[1], [0], [0], [1], [0, 0, 1, 1], [], []>} : vector<128x8xbf16>, vector<8x32xbf16>, vector<128x32xf32> -> vector<128x32xf32>
    %c0_3 = arith.constant 0 : index
    %c0_4 = arith.constant 0 : index
    %8 = vector.load %arg0[%c0_3, %c0_4] : memref<128x32xf32, #tpu.memory_space<vmem>>, vector<128x32xf32>
    %9 = arith.mulf %8, %7 : vector<128x32xf32>
    %c0_5 = arith.constant 0 : index
    %c0_6 = arith.constant 0 : index
    %10 = vector.load %arg3[%c0_5, %c0_6] : memref<32x128xbf16, #tpu.memory_space<vmem>>, vector<32x128xbf16>
    %c0_7 = arith.constant 0 : index
    %c0_8 = arith.constant 0 : index
    %11 = vector.load %arg4[%c0_7, %c0_8] : memref<1x128xf32, #tpu.memory_space<vmem>>, vector<1x128xf32>
    %c0_9 = arith.constant 0 : index
    %c0_10 = arith.constant 0 : index
    %12 = vector.load %arg5[%c0_9, %c0_10] : memref<1x128xf32, #tpu.memory_space<vmem>>, vector<1x128xf32>
    %c0_11 = arith.constant 0 : index
    %c0_12 = arith.constant 0 : index
    %13 = vector.load %arg6[%c0_11, %c0_12] : memref<1x128xf32, #tpu.memory_space<vmem>>, vector<1x128xf32>
    %14 = arith.truncf %9 : vector<128x32xf32> to vector<128x32xbf16>
    %cst_13 = arith.constant dense<0.000000e+00> : vector<128x128xf32>
    %15 = tpu.matmul %14, %10, %cst_13 {dimension_numbers = #tpu.dot_dimension_numbers<[1], [0], [0], [1], [0, 0, 1, 1], [], []>} : vector<128x32xbf16>, vector<32x128xbf16>, vector<128x128xf32> -> vector<128x128xf32>
    %16 = vector.broadcast %11 : vector<1x128xf32> to vector<128x128xf32>
    %17 = arith.addf %15, %16 : vector<128x128xf32>
    %cst_14 = arith.constant 0.000000e+00 : f32
    %18 = vector.broadcast %cst_14 : f32 to vector<128x128xf32>
    %19 = arith.cmpf ogt, %17, %18 : vector<128x128xf32>
    %cst_15 = arith.constant 2.000000e-01 : f32
    %20 = vector.broadcast %cst_15 : f32 to vector<128x128xf32>
    %21 = arith.mulf %20, %17 : vector<128x128xf32>
    %22 = arith.select %19, %17, %21 : vector<128x128xi1>, vector<128x128xf32>
    %cst_16 = arith.constant dense<0.000000e+00> : vector<128xf32>
    %23 = vector.multi_reduction <add>, %22, %cst_16 [0] : vector<128x128xf32> to vector<128xf32>
    %24 = vector.shape_cast %23 : vector<128xf32> to vector<1x128xf32>
    %cst_17 = arith.constant 7.812500e-03 : f32
    %25 = vector.broadcast %cst_17 : f32 to vector<1x128xf32>
    %26 = arith.mulf %24, %25 : vector<1x128xf32>
    %27 = arith.mulf %22, %22 : vector<128x128xf32>
    %cst_18 = arith.constant dense<0.000000e+00> : vector<128xf32>
    %28 = vector.multi_reduction <add>, %27, %cst_18 [0] : vector<128x128xf32> to vector<128xf32>
    %29 = vector.shape_cast %28 : vector<128xf32> to vector<1x128xf32>
    %cst_19 = arith.constant 7.812500e-03 : f32
    %30 = vector.broadcast %cst_19 : f32 to vector<1x128xf32>
    %31 = arith.mulf %29, %30 : vector<1x128xf32>
    %32 = arith.mulf %26, %26 : vector<1x128xf32>
    %33 = arith.subf %31, %32 : vector<1x128xf32>
    %cst_20 = arith.constant 0.000000e+00 : f32
    %34 = vector.broadcast %cst_20 : f32 to vector<1x128xf32>
    %35 = arith.maximumf %33, %34 : vector<1x128xf32>
    %cst_21 = arith.constant 9.99999974E-6 : f32
    %36 = vector.broadcast %cst_21 : f32 to vector<1x128xf32>
    %37 = arith.addf %35, %36 : vector<1x128xf32>
    %38 = math.rsqrt %37 : vector<1x128xf32>
    %39 = arith.mulf %12, %38 : vector<1x128xf32>
    %40 = arith.mulf %26, %39 : vector<1x128xf32>
    %41 = arith.subf %13, %40 : vector<1x128xf32>
    %42 = vector.broadcast %39 : vector<1x128xf32> to vector<128x128xf32>
    %43 = arith.mulf %22, %42 : vector<128x128xf32>
    %44 = vector.broadcast %41 : vector<1x128xf32> to vector<128x128xf32>
    %45 = arith.addf %43, %44 : vector<128x128xf32>
    %46 = arith.truncf %45 : vector<128x128xf32> to vector<128x128xbf16>
    %c0_22 = arith.constant 0 : index
    %c0_23 = arith.constant 0 : index
    %47 = vector.load %arg7[%c0_22, %c0_23] : memref<128x256xbf16, #tpu.memory_space<vmem>>, vector<128x256xbf16>
    %c0_24 = arith.constant 0 : index
    %c0_25 = arith.constant 0 : index
    %48 = vector.load %arg8[%c0_24, %c0_25] : memref<1x256xf32, #tpu.memory_space<vmem>>, vector<1x256xf32>
    %c0_26 = arith.constant 0 : index
    %c0_27 = arith.constant 0 : index
    %49 = vector.load %arg9[%c0_26, %c0_27] : memref<1x256xf32, #tpu.memory_space<vmem>>, vector<1x256xf32>
    %c0_28 = arith.constant 0 : index
    %c0_29 = arith.constant 0 : index
    %50 = vector.load %arg10[%c0_28, %c0_29] : memref<1x256xf32, #tpu.memory_space<vmem>>, vector<1x256xf32>
    %cst_30 = arith.constant dense<0.000000e+00> : vector<128x256xf32>
    %51 = tpu.matmul %46, %47, %cst_30 {dimension_numbers = #tpu.dot_dimension_numbers<[1], [0], [0], [1], [0, 0, 1, 1], [], []>} : vector<128x128xbf16>, vector<128x256xbf16>, vector<128x256xf32> -> vector<128x256xf32>
    %52 = vector.broadcast %48 : vector<1x256xf32> to vector<128x256xf32>
    %53 = arith.addf %51, %52 : vector<128x256xf32>
    %cst_31 = arith.constant 0.000000e+00 : f32
    %54 = vector.broadcast %cst_31 : f32 to vector<128x256xf32>
    %55 = arith.cmpf ogt, %53, %54 : vector<128x256xf32>
    %cst_32 = arith.constant 2.000000e-01 : f32
    %56 = vector.broadcast %cst_32 : f32 to vector<128x256xf32>
    %57 = arith.mulf %56, %53 : vector<128x256xf32>
    %58 = arith.select %55, %53, %57 : vector<128x256xi1>, vector<128x256xf32>
    %cst_33 = arith.constant dense<0.000000e+00> : vector<256xf32>
    %59 = vector.multi_reduction <add>, %58, %cst_33 [0] : vector<128x256xf32> to vector<256xf32>
    %60 = vector.shape_cast %59 : vector<256xf32> to vector<1x256xf32>
    %cst_34 = arith.constant 7.812500e-03 : f32
    %61 = vector.broadcast %cst_34 : f32 to vector<1x256xf32>
    %62 = arith.mulf %60, %61 : vector<1x256xf32>
    %63 = arith.mulf %58, %58 : vector<128x256xf32>
    %cst_35 = arith.constant dense<0.000000e+00> : vector<256xf32>
    %64 = vector.multi_reduction <add>, %63, %cst_35 [0] : vector<128x256xf32> to vector<256xf32>
    %65 = vector.shape_cast %64 : vector<256xf32> to vector<1x256xf32>
    %cst_36 = arith.constant 7.812500e-03 : f32
    %66 = vector.broadcast %cst_36 : f32 to vector<1x256xf32>
    %67 = arith.mulf %65, %66 : vector<1x256xf32>
    %68 = arith.mulf %62, %62 : vector<1x256xf32>
    %69 = arith.subf %67, %68 : vector<1x256xf32>
    %cst_37 = arith.constant 0.000000e+00 : f32
    %70 = vector.broadcast %cst_37 : f32 to vector<1x256xf32>
    %71 = arith.maximumf %69, %70 : vector<1x256xf32>
    %cst_38 = arith.constant 9.99999974E-6 : f32
    %72 = vector.broadcast %cst_38 : f32 to vector<1x256xf32>
    %73 = arith.addf %71, %72 : vector<1x256xf32>
    %74 = math.rsqrt %73 : vector<1x256xf32>
    %75 = arith.mulf %49, %74 : vector<1x256xf32>
    %76 = arith.mulf %62, %75 : vector<1x256xf32>
    %77 = arith.subf %50, %76 : vector<1x256xf32>
    %78 = vector.broadcast %75 : vector<1x256xf32> to vector<128x256xf32>
    %79 = arith.mulf %58, %78 : vector<128x256xf32>
    %80 = vector.broadcast %77 : vector<1x256xf32> to vector<128x256xf32>
    %81 = arith.addf %79, %80 : vector<128x256xf32>
    %82 = arith.truncf %81 : vector<128x256xf32> to vector<128x256xbf16>
    %c0_i32_39 = arith.constant 0 : i32
    %83 = tpu.memref_slice %arg20[%c0_i32_39] : memref<2x!tpu.dma_semaphore, #tpu.memory_space<semaphore_mem>> -> memref<1x!tpu.dma_semaphore, #tpu.memory_space<semaphore_mem>>
    %84 = tpu.memref_squeeze %83 : memref<1x!tpu.dma_semaphore, #tpu.memory_space<semaphore_mem>> -> memref<!tpu.dma_semaphore, #tpu.memory_space<semaphore_mem>>
    tpu.wait_dma2 semaphore(%84 : memref<!tpu.dma_semaphore, #tpu.memory_space<semaphore_mem>>) src(%arg15 : memref<256x512xbf16, #tpu.memory_space<any>>) dst(%arg18 : memref<256x512xbf16, #tpu.memory_space<vmem>>)
    %c0_40 = arith.constant 0 : index
    %c0_41 = arith.constant 0 : index
    %85 = vector.load %arg18[%c0_40, %c0_41] : memref<256x512xbf16, #tpu.memory_space<vmem>>, vector<256x512xbf16>
    %c0_42 = arith.constant 0 : index
    %c0_43 = arith.constant 0 : index
    %86 = vector.load %arg11[%c0_42, %c0_43] : memref<1x512xf32, #tpu.memory_space<vmem>>, vector<1x512xf32>
    %c0_44 = arith.constant 0 : index
    %c0_45 = arith.constant 0 : index
    %87 = vector.load %arg12[%c0_44, %c0_45] : memref<1x512xf32, #tpu.memory_space<vmem>>, vector<1x512xf32>
    %c0_46 = arith.constant 0 : index
    %c0_47 = arith.constant 0 : index
    %88 = vector.load %arg13[%c0_46, %c0_47] : memref<1x512xf32, #tpu.memory_space<vmem>>, vector<1x512xf32>
    %cst_48 = arith.constant dense<0.000000e+00> : vector<128x512xf32>
    %89 = tpu.matmul %82, %85, %cst_48 {dimension_numbers = #tpu.dot_dimension_numbers<[1], [0], [0], [1], [0, 0, 1, 1], [], []>} : vector<128x256xbf16>, vector<256x512xbf16>, vector<128x512xf32> -> vector<128x512xf32>
    %90 = vector.broadcast %86 : vector<1x512xf32> to vector<128x512xf32>
    %91 = arith.addf %89, %90 : vector<128x512xf32>
    %cst_49 = arith.constant 0.000000e+00 : f32
    %92 = vector.broadcast %cst_49 : f32 to vector<128x512xf32>
    %93 = arith.cmpf ogt, %91, %92 : vector<128x512xf32>
    %cst_50 = arith.constant 2.000000e-01 : f32
    %94 = vector.broadcast %cst_50 : f32 to vector<128x512xf32>
    %95 = arith.mulf %94, %91 : vector<128x512xf32>
    %96 = arith.select %93, %91, %95 : vector<128x512xi1>, vector<128x512xf32>
    %cst_51 = arith.constant dense<0.000000e+00> : vector<512xf32>
    %97 = vector.multi_reduction <add>, %96, %cst_51 [0] : vector<128x512xf32> to vector<512xf32>
    %98 = vector.shape_cast %97 : vector<512xf32> to vector<1x512xf32>
    %cst_52 = arith.constant 7.812500e-03 : f32
    %99 = vector.broadcast %cst_52 : f32 to vector<1x512xf32>
    %100 = arith.mulf %98, %99 : vector<1x512xf32>
    %101 = arith.mulf %96, %96 : vector<128x512xf32>
    %cst_53 = arith.constant dense<0.000000e+00> : vector<512xf32>
    %102 = vector.multi_reduction <add>, %101, %cst_53 [0] : vector<128x512xf32> to vector<512xf32>
    %103 = vector.shape_cast %102 : vector<512xf32> to vector<1x512xf32>
    %cst_54 = arith.constant 7.812500e-03 : f32
    %104 = vector.broadcast %cst_54 : f32 to vector<1x512xf32>
    %105 = arith.mulf %103, %104 : vector<1x512xf32>
    %106 = arith.mulf %100, %100 : vector<1x512xf32>
    %107 = arith.subf %105, %106 : vector<1x512xf32>
    %cst_55 = arith.constant 0.000000e+00 : f32
    %108 = vector.broadcast %cst_55 : f32 to vector<1x512xf32>
    %109 = arith.maximumf %107, %108 : vector<1x512xf32>
    %cst_56 = arith.constant 9.99999974E-6 : f32
    %110 = vector.broadcast %cst_56 : f32 to vector<1x512xf32>
    %111 = arith.addf %109, %110 : vector<1x512xf32>
    %112 = math.rsqrt %111 : vector<1x512xf32>
    %113 = arith.mulf %87, %112 : vector<1x512xf32>
    %114 = arith.mulf %100, %113 : vector<1x512xf32>
    %115 = arith.subf %88, %114 : vector<1x512xf32>
    %116 = vector.broadcast %113 : vector<1x512xf32> to vector<128x512xf32>
    %117 = arith.mulf %96, %116 : vector<128x512xf32>
    %118 = vector.broadcast %115 : vector<1x512xf32> to vector<128x512xf32>
    %119 = arith.addf %117, %118 : vector<128x512xf32>
    %120 = arith.truncf %119 : vector<128x512xf32> to vector<128x512xbf16>
    %c1_i32_57 = arith.constant 1 : i32
    %121 = tpu.memref_slice %arg20[%c1_i32_57] : memref<2x!tpu.dma_semaphore, #tpu.memory_space<semaphore_mem>> -> memref<1x!tpu.dma_semaphore, #tpu.memory_space<semaphore_mem>>
    %122 = tpu.memref_squeeze %121 : memref<1x!tpu.dma_semaphore, #tpu.memory_space<semaphore_mem>> -> memref<!tpu.dma_semaphore, #tpu.memory_space<semaphore_mem>>
    tpu.wait_dma2 semaphore(%122 : memref<!tpu.dma_semaphore, #tpu.memory_space<semaphore_mem>>) src(%arg16 : memref<512x128xbf16, #tpu.memory_space<any>>) dst(%arg19 : memref<512x128xbf16, #tpu.memory_space<vmem>>)
    %c0_58 = arith.constant 0 : index
    %c0_59 = arith.constant 0 : index
    %123 = vector.load %arg19[%c0_58, %c0_59] : memref<512x128xbf16, #tpu.memory_space<vmem>>, vector<512x128xbf16>
    %cst_60 = arith.constant dense<0.000000e+00> : vector<128x128xf32>
    %124 = tpu.matmul %120, %123, %cst_60 {dimension_numbers = #tpu.dot_dimension_numbers<[1], [0], [0], [1], [0, 0, 1, 1], [], []>} : vector<128x512xbf16>, vector<512x128xbf16>, vector<128x128xf32> -> vector<128x128xf32>
    %c0_61 = arith.constant 0 : index
    %c0_62 = arith.constant 0 : index
    %125 = vector.load %arg14[%c0_61, %c0_62] : memref<1x128xf32, #tpu.memory_space<vmem>>, vector<1x128xf32>
    %126 = vector.broadcast %125 : vector<1x128xf32> to vector<128x128xf32>
    %127 = arith.addf %124, %126 : vector<128x128xf32>
    %128 = math.tanh %127 : vector<128x128xf32>
    %c0_63 = arith.constant 0 : index
    %c0_64 = arith.constant 0 : index
    %129 = vector.load %arg17[%c0_63, %c0_64] : memref<128x128xf32, #tpu.memory_space<vmem>>, vector<128x128xf32>
    tpu.vector_store %arg17[%c0_63, %c0_64], %128 {strides = array<i32>} : memref<128x128xf32, #tpu.memory_space<vmem>>, vector<128x128xf32>,
    return
  }
}

</mosaic_0001>

<llo_original>
// kernel: generator_forward.1
$region0: #{generator_forward.1}
  #allocation0 [shape = 'u32[]', space=smem, size = 0x4, offset = 0x4, fixed_abs, tag = 'smem constant byte address 0x4 - core index']
  #allocation1 [shape = 'u32[144,128]{1,0:T(1,128)}', space=vmem, size = 0x12000, scoped, tag = 'internal scratch']
  #allocation2 [shape = 'bf16[256,512]{1,0:T(16,128)(2,1)}', space=vmem, size = 0x40000, scoped, tag = 'scratch operand']
  #allocation3 [shape = 'bf16[512,128]{1,0:T(16,128)(2,1)}', space=vmem, size = 0x20000, scoped, tag = 'scratch operand']
  #allocation4 [shape = 's32[2]{0}', space=sflag, size = 0x8, scoped, tag = 'scratch operand']
  #allocation19 [shape = 's32[]', space=sflag, size = 0x4, offset = 0, fixed_abs, tag = 'sflag constant byte address 0x0 - dummy sync flag']
  #allocation21 [shape = 's32[]', space=sflag, size = 0x4, offset = 0, fixed_abs, tag = 'sflag constant byte address 0x0 - dummy sync flag']
  %s0 = inlined_call_operand.vmem [shape: f32[128,32], index: 0, kind: input, shape index: {}]
  %s1 = inlined_call_operand.vmem [shape: bf16[128,8], index: 1, kind: input, shape index: {}]
  %s2 = inlined_call_operand.vmem [shape: f32[8,32], index: 2, kind: input, shape index: {}]
  %s3 = inlined_call_operand.vmem [shape: bf16[32,128], index: 3, kind: input, shape index: {}]
  %s4 = inlined_call_operand.vmem [shape: f32[1,128], index: 4, kind: input, shape index: {}]
  %s5 = inlined_call_operand.hbm [shape: f32[1,128], index: 5, kind: input, shape index: {}]
  %s6 = inlined_call_operand.hbm [shape: f32[1,128], index: 6, kind: input, shape index: {}]
  %s7 = inlined_call_operand.hbm [shape: bf16[128,256], index: 7, kind: input, shape index: {}]
  %s8 = inlined_call_operand.hbm [shape: f32[1,256], index: 8, kind: input, shape index: {}]
  %s9 = inlined_call_operand.hbm [shape: f32[1,256], index: 9, kind: input, shape index: {}]
  %s10 = inlined_call_operand.hbm [shape: f32[1,256], index: 10, kind: input, shape index: {}]
  %s11 = inlined_call_operand.vmem [shape: f32[1,512], index: 11, kind: input, shape index: {}]
  %s12 = inlined_call_operand.hbm [shape: f32[1,512], index: 12, kind: input, shape index: {}]
  %s13 = inlined_call_operand.hbm [shape: f32[1,512], index: 13, kind: input, shape index: {}]
  %s14 = inlined_call_operand.hbm [shape: f32[1,128], index: 14, kind: input, shape index: {}]
  %s15 = inlined_call_operand.hbm [shape: bf16[256,512], index: 15, kind: input, shape index: {}]
  %s16 = inlined_call_operand.vmem [shape: bf16[512,128], index: 16, kind: input, shape index: {}]
  %s17 = inlined_call_operand.vmem [shape: f32[128,128], index: 17, kind: output, shape index: {}]
  %s18 = sld [smem:[#allocation0]]
  $region140: #{generator_forward.1} parent=0
    _
  %s20 = ssub.s32 1, %s18
  %s21 = scalar_select 0, %s20, %s18
  $region1: #{generator_forward.1} parent=0
    #allocation5 [shape = 'u8[512]{0}', space=vmem, size = 0x400, scoped, tag = 'input window, operand 5, single buffered']
    #allocation6 [shape = 's32[1]{0}', space=sflag, size = 0x4, scoped, tag = 'scoped memory for generator_forward.1']
    #allocation7 [shape = 'u8[512]{0}', space=vmem, size = 0x400, scoped, tag = 'input window, operand 6, single buffered']
    #allocation8 [shape = 's32[1]{0}', space=sflag, size = 0x4, scoped, tag = 'scoped memory for generator_forward.1']
    #allocation9 [shape = 'u8[65536]{0}', space=vmem, size = 0x10000, scoped, tag = 'input window, operand 7, single buffered']
    #allocation10 [shape = 'u8[1024]{0}', space=vmem, size = 0x400, scoped, tag = 'input window, operand 8, single buffered']
    #allocation11 [shape = 's32[1]{0}', space=sflag, size = 0x4, scoped, tag = 'scoped memory for generator_forward.1']
    #allocation12 [shape = 'u8[1024]{0}', space=vmem, size = 0x400, scoped, tag = 'input window, operand 9, single buffered']
    #allocation13 [shape = 'u8[1024]{0}', space=vmem, size = 0x400, scoped, tag = 'input window, operand 10, single buffered']
    #allocation14 [shape = 's32[1]{0}', space=sflag, size = 0x4, scoped, tag = 'scoped memory for generator_forward.1']
    #allocation15 [shape = 'u8[2048]{0}', space=vmem, size = 0x800, scoped, tag = 'input window, operand 12, single buffered']
    #allocation16 [shape = 'u8[2048]{0}', space=vmem, size = 0x800, scoped, tag = 'input window, operand 13, single buffered']
    #allocation17 [shape = 's32[1]{0}', space=sflag, size = 0x4, scoped, tag = 'scoped memory for generator_forward.1']
    #allocation18 [shape = 'u8[512]{0}', space=vmem, size = 0x400, scoped, tag = 'input window, operand 14, single buffered']
    #allocation20 [shape = 'u32[9]{0}', space=smem, size = 0x24, scoped, tag = 'DMA stride descriptor']
    %22 = vsyncpa [#allocation6], 0
    %23 = vsyncpa [#allocation8], 0
    %24 = vsyncpa [#allocation11], 0
    %25 = vsyncpa [#allocation14], 0
    %26 = vsyncpa [#allocation17], 0
    // Predicated region
    $region2: #{generator_forward.1} parent=1 // pred_check
      _
    $region3: #{generator_forward.1} parent=1 // pred_check_branch
      %28 = sbr.rel (0) target = $region5
    $region4: #{generator_forward.1} parent=1 // pred_region
      _
    $region5: #{generator_forward.1} parent=1 // pred_fallthru
      _
    // Predicated region
    $region6: #{generator_forward.1} parent=1 // pred_check
      _
    $region7: #{generator_forward.1} parent=1 // pred_check_branch
      %30 = sbr.rel (0) target = $region9
    $region8: #{generator_forward.1} parent=1 // pred_region
      _
    $region9: #{generator_forward.1} parent=1 // pred_fallthru
      _
    // Predicated region
    $region10: #{generator_forward.1} parent=1 // pred_check
      _
    $region11: #{generator_forward.1} parent=1 // pred_check_branch
      %32 = sbr.rel (0) target = $region13
    $region12: #{generator_forward.1} parent=1 // pred_region
      _
    $region13: #{generator_forward.1} parent=1 // pred_fallthru
      _
    // Predicated region
    $region14: #{generator_forward.1} parent=1 // pred_check
      _
    $region15: #{generator_forward.1} parent=1 // pred_check_branch
      %34 = sbr.rel (0) target = $region17
    $region16: #{generator_forward.1} parent=1 // pred_region
      _
    $region17: #{generator_forward.1} parent=1 // pred_fallthru
      _
    // Predicated region
    $region18: #{generator_forward.1} parent=1 // pred_check
      _
    $region19: #{generator_forward.1} parent=1 // pred_check_branch
      %36 = sbr.rel (0) target = $region21
    $region20: #{generator_forward.1} parent=1 // pred_region
      _
    $region21: #{generator_forward.1} parent=1 // pred_fallthru
      _
    // Predicated region
    $region22: #{generator_forward.1} parent=1 // pred_check
      _
    $region23: #{generator_forward.1} parent=1 // pred_check_branch
      %38 = sbr.rel (0) target = $region25
    $region24: #{generator_forward.1} parent=1 // pred_region
      %s40 = ssub.s32 16, 16
      %41 = vsyncadd [#allocation6], %s40
      %s43 = sshll.u32 [#allocation5], 4
      %s44 = int_to_ptr.vmem [resolvable:$true] %s43
      %46 = dma.hbm_to_vmem [thread:$0]  %s5, 16, %s44, [#allocation6]
    $region25: #{generator_forward.1} parent=1 // pred_fallthru
      _
    // Predicated region
    $region26: #{generator_forward.1} parent=1 // pred_check
      _
    $region27: #{generator_forward.1} parent=1 // pred_check_branch
      %48 = sbr.rel (0) target = $region29
    $region28: #{generator_forward.1} parent=1 // pred_region
      %s50 = ssub.s32 16, 16
      %51 = vsyncadd [#allocation8], %s50
      %s53 = sshll.u32 [#allocation7], 4
      %s54 = int_to_ptr.vmem [resolvable:$true] %s53
      %56 = dma.hbm_to_vmem [thread:$0]  %s6, 16, %s54, [#allocation8]
    $region29: #{generator_forward.1} parent=1 // pred_fallthru
      _
    // Predicated region
    $region30: #{generator_forward.1} parent=1 // pred_check
      _
    $region31: #{generator_forward.1} parent=1 // pred_check_branch
      %58 = sbr.rel (0) target = $region33
    $region32: #{generator_forward.1} parent=1 // pred_region
      %s60 = ssub.s32 2048, 2048
      %61 = vsyncadd [#allocation8], %s60
      %s62 = sshll.u32 [#allocation9], 4
      %s63 = int_to_ptr.vmem [resolvable:$true] %s62
      %68 = dma.hbm_to_vmem [thread:$0]  %s7, 2048, %s63, [#allocation8], 128, 128, 8
    $region33: #{generator_forward.1} parent=1 // pred_fallthru
      _
    // Predicated region
    $region34: #{generator_forward.1} parent=1 // pred_check
      _
    $region35: #{generator_forward.1} parent=1 // pred_check_branch
      %70 = sbr.rel (0) target = $region37
    $region36: #{generator_forward.1} parent=1 // pred_region
      %s72 = ssub.s32 32, 32
      %73 = vsyncadd [#allocation11], %s72
      %s75 = sshll.u32 [#allocation10], 4
      %s76 = int_to_ptr.vmem [resolvable:$true] %s75
      %78 = dma.hbm_to_vmem [thread:$0]  %s8, 32, %s76, [#allocation11]
    $region37: #{generator_forward.1} parent=1 // pred_fallthru
      _
    // Predicated region
    $region38: #{generator_forward.1} parent=1 // pred_check
      _
    $region39: #{generator_forward.1} parent=1 // pred_check_branch
      %80 = sbr.rel (0) target = $region41
    $region40: #{generator_forward.1} parent=1 // pred_region
      %s82 = ssub.s32 32, 32
      %83 = vsyncadd [#allocation11], %s82
      %s85 = sshll.u32 [#allocation12], 4
      %s86 = int_to_ptr.vmem [resolvable:$true] %s85
      %88 = dma.hbm_to_vmem [thread:$0]  %s9, 32, %s86, [#allocation11]
    $region41: #{generator_forward.1} parent=1 // pred_fallthru
      _
    // Predicated region
    $region42: #{generator_forward.1} parent=1 // pred_check
      _
    $region43: #{generator_forward.1} parent=1 // pred_check_branch
      %90 = sbr.rel (0) target = $region45
    $region44: #{generator_forward.1} parent=1 // pred_region
      %s92 = ssub.s32 32, 32
      %93 = vsyncadd [#allocation14], %s92
      %s95 = sshll.u32 [#allocation13], 4
      %s96 = int_to_ptr.vmem [resolvable:$true] %s95
      %98 = dma.hbm_to_vmem [thread:$0]  %s10, 32, %s96, [#allocation14]
    $region45: #{generator_forward.1} parent=1 // pred_fallthru
      _
    // Predicated region
    $region46: #{generator_forward.1} parent=1 // pred_check
      _
    $region47: #{generator_forward.1} parent=1 // pred_check_branch
      %100 = sbr.rel (0) target = $region49
    $region48: #{generator_forward.1} parent=1 // pred_region
      _
    $region49: #{generator_forward.1} parent=1 // pred_fallthru
      _
    // Predicated region
    $region50: #{generator_forward.1} parent=1 // pred_check
      _
    $region51: #{generator_forward.1} parent=1 // pred_check_branch
      %102 = sbr.rel (0) target = $region53
    $region52: #{generator_forward.1} parent=1 // pred_region
      %s104 = ssub.s32 64, 64
      %105 = vsyncadd [#allocation14], %s104
      %s107 = sshll.u32 [#allocation15], 4
      %s108 = int_to_ptr.vmem [resolvable:$true] %s107
      %110 = dma.hbm_to_vmem [thread:$0]  %s12, 64, %s108, [#allocation14]
    $region53: #{generator_forward.1} parent=1 // pred_fallthru
      _
    // Predicated region
    $region54: #{generator_forward.1} parent=1 // pred_check
      _
    $region55: #{generator_forward.1} parent=1 // pred_check_branch
      %112 = sbr.rel (0) target = $region57
    $region56: #{generator_forward.1} parent=1 // pred_region
      %s114 = ssub.s32 64, 64
      %115 = vsyncadd [#allocation17], %s114
      %s117 = sshll.u32 [#allocation16], 4
      %s118 = int_to_ptr.vmem [resolvable:$true] %s117
      %120 = dma.hbm_to_vmem [thread:$0]  %s13, 64, %s118, [#allocation17]
    $region57: #{generator_forward.1} parent=1 // pred_fallthru
      _
    // Predicated region
    $region58: #{generator_forward.1} parent=1 // pred_check
      _
    $region59: #{generator_forward.1} parent=1 // pred_check_branch
      %122 = sbr.rel (0) target = $region61
    $region60: #{generator_forward.1} parent=1 // pred_region
      %s124 = ssub.s32 16, 16
      %125 = vsyncadd [#allocation17], %s124
      %s127 = sshll.u32 [#allocation18], 4
      %s128 = int_to_ptr.vmem [resolvable:$true] %s127
      %130 = dma.hbm_to_vmem [thread:$0]  %s14, 16, %s128, [#allocation17]
    $region61: #{generator_forward.1} parent=1 // pred_fallthru
      _
    // Predicated region
    $region62: #{generator_forward.1} parent=1 // pred_check
      _
    $region63: #{generator_forward.1} parent=1 // pred_check_branch
      %132 = sbr.rel (0) target = $region65
    $region64: #{generator_forward.1} parent=1 // pred_region
      %133 = dma.done [#allocation6], 16
    $region65: #{generator_forward.1} parent=1 // pred_fallthru
      _
    // Predicated region
    $region66: #{generator_forward.1} parent=1 // pred_check
      _
    $region67: #{generator_forward.1} parent=1 // pred_check_branch
      %135 = sbr.rel (0) target = $region69
    $region68: #{generator_forward.1} parent=1 // pred_region
      %136 = dma.done [#allocation8], 16
    $region69: #{generator_forward.1} parent=1 // pred_fallthru
      _
    // Predicated region
    $region70: #{generator_forward.1} parent=1 // pred_check
      _
    $region71: #{generator_forward.1} parent=1 // pred_check_branch
      %138 = sbr.rel (0) target = $region73
    $region72: #{generator_forward.1} parent=1 // pred_region
      %139 = dma.done [#allocation8], 2048
    $region73: #{generator_forward.1} parent=1 // pred_fallthru
      _
    // Predicated region
    $region74: #{generator_forward.1} parent=1 // pred_check
      _
    $region75: #{generator_forward.1} parent=1 // pred_check_branch
      %141 = sbr.rel (0) target = $region77
    $region76: #{generator_forward.1} parent=1 // pred_region
      %142 = dma.done [#allocation11], 32
    $region77: #{generator_forward.1} parent=1 // pred_fallthru
      _
    // Predicated region
    $region78: #{generator_forward.1} parent=1 // pred_check
      _
    $region79: #{generator_forward.1} parent=1 // pred_check_branch
      %144 = sbr.rel (0) target = $region81
    $region80: #{generator_forward.1} parent=1 // pred_region
      %145 = dma.done [#allocation11], 32
    $region81: #{generator_forward.1} parent=1 // pred_fallthru
      _
    // Predicated region
    $region82: #{generator_forward.1} parent=1 // pred_check
      _
    $region83: #{generator_forward.1} parent=1 // pred_check_branch
      %147 = sbr.rel (0) target = $region85
    $region84: #{generator_forward.1} parent=1 // pred_region
      %148 = dma.done [#allocation14], 32
    $region85: #{generator_forward.1} parent=1 // pred_fallthru
      _
    // Predicated region
    $region86: #{generator_forward.1} parent=1 // pred_check
      _
    $region87: #{generator_forward.1} parent=1 // pred_check_branch
      %150 = sbr.rel (0) target = $region89
    $region88: #{generator_forward.1} parent=1 // pred_region
      %151 = dma.done [#allocation14], 64
    $region89: #{generator_forward.1} parent=1 // pred_fallthru
      _
    // Predicated region
    $region90: #{generator_forward.1} parent=1 // pred_check
      _
    $region91: #{generator_forward.1} parent=1 // pred_check_branch
      %153 = sbr.rel (0) target = $region93
    $region92: #{generator_forward.1} parent=1 // pred_region
      %154 = dma.done [#allocation17], 64
    $region93: #{generator_forward.1} parent=1 // pred_fallthru
      _
    // Predicated region
    $region94: #{generator_forward.1} parent=1 // pred_check
      _
    $region95: #{generator_forward.1} parent=1 // pred_check_branch
      %156 = sbr.rel (0) target = $region97
    $region96: #{generator_forward.1} parent=1 // pred_region
      %157 = dma.done [#allocation17], 16
    $region97: #{generator_forward.1} parent=1 // pred_fallthru
      _
    %s160 = sshll.u32 1, 14
    %s161 = sxor.u32 4294967295, %s160
    %s163 = sld [smem:[#allocation0]]
    %s164 = sadd.s32 2, %s163
    %s166 = sshll.u32 7, 26
    %s167 = sxor.u32 4294967295, %s166
    %s168 = sand.u32 0, %s167
    %s169 = sshll.u32 %s164, 26
    %s170 = sor.u32 %s168, %s169
    %s171 = sshll.u32 [#allocation2], 4
    %s172 = int_to_ptr.vmem [resolvable:$true] %s171
    %175 = sst [smem:[#allocation20]] 512
    %s176 = scalar_lea.smem [#allocation20], 1
    %177 = sst [smem:[%s176]] 512
    %s178 = scalar_lea.smem [#allocation20], 2
    %179 = sst [smem:[%s178]] 4
    %s180 = scalar_lea.smem [#allocation20], 3
    %181 = sst [smem:[%s180]] 64
    %s182 = scalar_lea.smem [#allocation20], 4
    %183 = sst [smem:[%s182]] 128
    %s184 = scalar_lea.smem [#allocation20], 5
    %185 = sst [smem:[%s184]] 2
    %s186 = scalar_lea.smem [#allocation20], 6
    %187 = sst [smem:[%s186]] 256
    %s188 = scalar_lea.smem [#allocation20], 7
    %189 = sst [smem:[%s188]] 64
    %s190 = scalar_lea.smem [#allocation20], 8
    %191 = sst [smem:[%s190]] 4
    %193 = dma.general %s15, 8192, %s172, [#allocation4], [#allocation19], [#allocation20], %s170, 0
    %s194 = scalar_lea.sflag [#allocation4], 1
    %p196 = scmp.lt.u32.totalorder 256, 8
    %p197 = pneg %p196
    // Predicated region
    $region98: #{generator_forward.1} parent=1 // pred_check
      _
    $region99: #{generator_forward.1} parent=1 // pred_check_branch
      %199 = sbr.rel (%p196) target = $region101
    $region100: #{generator_forward.1} parent=1 // pred_region
      %s214 = sand.u32 256, 7
      %p215 = scmp.eq.s32.totalorder %s214, 0
      // Predicated region
      $region113: #{generator_forward.1} parent=100 // pred_check
        %p216 = pneg %p215
      $region114: #{generator_forward.1} parent=100 // pred_check_branch
        %218 = sbr.rel (%p216) target = $region116
      $region115: #{generator_forward.1} parent=100 // pred_region
        loop: start=0, step=1, limit=1
        $region117: #{generator_forward.1} parent=115 // loop_pre_header
          _
        $region118: #{generator_forward.1} parent=115 // loop_header
          %s220 = sphi 0, %s224
          %p221 = scmp.ge.s32.totalorder %s220, 1
          %s225 = sphi %s16, %s16
          %s226 = sphi [#allocation3], [#allocation3]
        $region119: #{generator_forward.1} parent=115 // loop_header_branch
          %223 = sbr.rel (%p221) target = $region123
        $region120: #{generator_forward.1} parent=115 // loop_body
          %v227 = vld [vmem:[%s225] sm:$0xff]
          %228 = vst [vmem:[%s226] sm:$0xff] %v227
          %v229 = vld [vmem:[%s225 + $0x8] sm:$0xff]
          %230 = vst [vmem:[%s226 + $0x8] sm:$0xff] %v229
          %v231 = vld [vmem:[%s225 + $0x10] sm:$0xff]
          %232 = vst [vmem:[%s226 + $0x10] sm:$0xff] %v231
          %v233 = vld [vmem:[%s225 + $0x18] sm:$0xff]
          %234 = vst [vmem:[%s226 + $0x18] sm:$0xff] %v233
          %v235 = vld [vmem:[%s225 + $0x20] sm:$0xff]
          %236 = vst [vmem:[%s226 + $0x20] sm:$0xff] %v235
          %v237 = vld [vmem:[%s225 + $0x28] sm:$0xff]
          %238 = vst [vmem:[%s226 + $0x28] sm:$0xff] %v237
          %v239 = vld [vmem:[%s225 + $0x30] sm:$0xff]
          %240 = vst [vmem:[%s226 + $0x30] sm:$0xff] %v239
          %v241 = vld [vmem:[%s225 + $0x38] sm:$0xff]
          %242 = vst [vmem:[%s226 + $0x38] sm:$0xff] %v241
          %v243 = vld [vmem:[%s225 + $0x40] sm:$0xff]
          %244 = vst [vmem:[%s226 + $0x40] sm:$0xff] %v243
          %v245 = vld [vmem:[%s225 + $0x48] sm:$0xff]
          %246 = vst [vmem:[%s226 + $0x48] sm:$0xff] %v245
          %v247 = vld [vmem:[%s225 + $0x50] sm:$0xff]
          %248 = vst [vmem:[%s226 + $0x50] sm:$0xff] %v247
          %v249 = vld [vmem:[%s225 + $0x58] sm:$0xff]
          %250 = vst [vmem:[%s226 + $0x58] sm:$0xff] %v249
          %v251 = vld [vmem:[%s225 + $0x60] sm:$0xff]
          %252 = vst [vmem:[%s226 + $0x60] sm:$0xff] %v251
          %v253 = vld [vmem:[%s225 + $0x68] sm:$0xff]
          %254 = vst [vmem:[%s226 + $0x68] sm:$0xff] %v253
          %v255 = vld [vmem:[%s225 + $0x70] sm:$0xff]
          %256 = vst [vmem:[%s226 + $0x70] sm:$0xff] %v255
          %v257 = vld [vmem:[%s225 + $0x78] sm:$0xff]
          %258 = vst [vmem:[%s226 + $0x78] sm:$0xff] %v257
          %v259 = vld [vmem:[%s225 + $0x80] sm:$0xff]
          %260 = vst [vmem:[%s226 + $0x80] sm:$0xff] %v259
          %v261 = vld [vmem:[%s225 + $0x88] sm:$0xff]
          %262 = vst [vmem:[%s226 + $0x88] sm:$0xff] %v261
          %v263 = vld [vmem:[%s225 + $0x90] sm:$0xff]
          %264 = vst [vmem:[%s226 + $0x90] sm:$0xff] %v263
          %v265 = vld [vmem:[%s225 + $0x98] sm:$0xff]
          %266 = vst [vmem:[%s226 + $0x98] sm:$0xff] %v265
          %v267 = vld [vmem:[%s225 + $0xa0] sm:$0xff]
          %268 = vst [vmem:[%s226 + $0xa0] sm:$0xff] %v267
          %v269 = vld [vmem:[%s225 + $0xa8] sm:$0xff]
          %270 = vst [vmem:[%s226 + $0xa8] sm:$0xff] %v269
          %v271 = vld [vmem:[%s225 + $0xb0] sm:$0xff]
          %272 = vst [vmem:[%s226 + $0xb0] sm:$0xff] %v271
          %v273 = vld [vmem:[%s225 + $0xb8] sm:$0xff]
          %274 = vst [vmem:[%s226 + $0xb8] sm:$0xff] %v273
          %v275 = vld [vmem:[%s225 + $0xc0] sm:$0xff]
          %276 = vst [vmem:[%s226 + $0xc0] sm:$0xff] %v275
          %v277 = vld [vmem:[%s225 + $0xc8] sm:$0xff]
          %278 = vst [vmem:[%s226 + $0xc8] sm:$0xff] %v277
          %v279 = vld [vmem:[%s225 + $0xd0] sm:$0xff]
          %280 = vst [vmem:[%s226 + $0xd0] sm:$0xff] %v279
          %v281 = vld [vmem:[%s225 + $0xd8] sm:$0xff]
          %282 = vst [vmem:[%s226 + $0xd8] sm:$0xff] %v281
          %v283 = vld [vmem:[%s225 + $0xe0] sm:$0xff]
          %284 = vst [vmem:[%s226 + $0xe0] sm:$0xff] %v283
          %v285 = vld [vmem:[%s225 + $0xe8] sm:$0xff]
          %286 = vst [vmem:[%s226 + $0xe8] sm:$0xff] %v285
          %v287 = vld [vmem:[%s225 + $0xf0] sm:$0xff]
          %288 = vst [vmem:[%s226 + $0xf0] sm:$0xff] %v287
          %v289 = vld [vmem:[%s225 + $0xf8] sm:$0xff]
          %290 = vst [vmem:[%s226 + $0xf8] sm:$0xff] %v289
        $region121: #{generator_forward.1} parent=115 // loop_footer
          %s224 = sadd.s32 1, %s220
        $region122: #{generator_forward.1} parent=115 // loop_footer_branch
          %219 = sbr.rel target = $region118
        $region123: #{generator_forward.1} parent=115 // loop_exit
          _
      $region116: #{generator_forward.1} parent=100 // pred_fallthru
        _
      %p291 = pneg %p215
      // Predicated region
      $region124: #{generator_forward.1} parent=100 // pred_check
        _
      $region125: #{generator_forward.1} parent=100 // pred_check_branch
        %293 = sbr.rel (%p215) target = $region127
      $region126: #{generator_forward.1} parent=100 // pred_region
        %s294 = sand.u32 256, 7
      $region127: #{generator_forward.1} parent=100 // pred_fallthru
        _
    $region101: #{generator_forward.1} parent=1 // pred_fallthru
      _
    // Predicated region
    $region102: #{generator_forward.1} parent=1 // pred_check
      %p200 = pneg %p196
    $region103: #{generator_forward.1} parent=1 // pred_check_branch
      %202 = sbr.rel (%p200) target = $region105
    $region104: #{generator_forward.1} parent=1 // pred_region
      %s203 = sshllo.u32 0, 256
      loop: start=0, step=1, limit=1
      $region106: #{generator_forward.1} parent=104 // loop_pre_header
        _
      $region107: #{generator_forward.1} parent=104 // loop_header
        %s205 = sphi 0, %s209
        %p206 = scmp.ge.s32.totalorder %s205, 1
        %s210 = sphi %s16, %s16
        %s211 = sphi [#allocation3], [#allocation3]
      $region108: #{generator_forward.1} parent=104 // loop_header_branch
        %208 = sbr.rel (%p206) target = $region112
      $region109: #{generator_forward.1} parent=104 // loop_body
        %v212 = vld [vmem:[%s210] sm:%s203]
        %213 = vst [vmem:[%s211] sm:%s203] %v212
      $region110: #{generator_forward.1} parent=104 // loop_footer
        %s209 = sadd.s32 1, %s205
      $region111: #{generator_forward.1} parent=104 // loop_footer_branch
        %204 = sbr.rel target = $region107
      $region112: #{generator_forward.1} parent=104 // loop_exit
        _
    $region105: #{generator_forward.1} parent=1 // pred_fallthru
      _
    // Predicated region
    $region128: #{generator_forward.1} parent=1 // pred_check
      _
    $region129: #{generator_forward.1} parent=1 // pred_check_branch
      %297 = sbr.rel (0) target = $region131
    $region130: #{generator_forward.1} parent=1 // pred_region
      %298 = vsyncadd %s194, 4096
    $region131: #{generator_forward.1} parent=1 // pred_fallthru
      _
    %v299 = vld [vmem:[%s1] sm:$0xf]
    %v300 = vld [vmem:[%s1 + $0x4] sm:$0xf]
    %v301 = vld [vmem:[%s1 + $0x8] sm:$0xf]
    %v302 = vld [vmem:[%s1 + $0xc] sm:$0xf]
    %v303 = vld [vmem:[%s1 + $0x10] sm:$0xf]
    %v304 = vld [vmem:[%s1 + $0x14] sm:$0xf]
    %v305 = vld [vmem:[%s1 + $0x18] sm:$0xf]
    %v306 = vld [vmem:[%s1 + $0x1c] sm:$0xf]
    %v307 = vld [vmem:[%s1 + $0x20] sm:$0xf]
    %v308 = vld [vmem:[%s1 + $0x24] sm:$0xf]
    %v309 = vld [vmem:[%s1 + $0x28] sm:$0xf]
    %v310 = vld [vmem:[%s1 + $0x2c] sm:$0xf]
    %v311 = vld [vmem:[%s1 + $0x30] sm:$0xf]
    %v312 = vld [vmem:[%s1 + $0x34] sm:$0xf]
    %v313 = vld [vmem:[%s1 + $0x38] sm:$0xf]
    %v314 = vld [vmem:[%s1 + $0x3c] sm:$0xf]
    %v315 = vld [vmem:[%s2] sm:$0xff]
    %v316 = vpack.c.bf16 %v315, %v315
    %v333 = vunpack.c.l.b16 %v299
    %v334 = vunpack.c.l.b16 %v300
    %v335 = vunpack.c.l.b16 %v301
    %v336 = vunpack.c.l.b16 %v302
    %v337 = vunpack.c.l.b16 %v303
    %v338 = vunpack.c.l.b16 %v304
    %v339 = vunpack.c.l.b16 %v305
    %v340 = vunpack.c.l.b16 %v306
    %v341 = vunpack.c.l.b16 %v307
    %v342 = vunpack.c.l.b16 %v308
    %v343 = vunpack.c.l.b16 %v309
    %v344 = vunpack.c.l.b16 %v310
    %v345 = vunpack.c.l.b16 %v311
    %v346 = vunpack.c.l.b16 %v312
    %v347 = vunpack.c.l.b16 %v313
    %v348 = vunpack.c.l.b16 %v314
    %v349 = vpack.c.b16 %v334, %v333
    %v350 = vpack.c.b16 %v336, %v335
    %v351 = vpack.c.b16 %v338, %v337
    %v352 = vpack.c.b16 %v340, %v339
    %v353 = vpack.c.b16 %v342, %v341
    %v354 = vpack.c.b16 %v344, %v343
    %v355 = vpack.c.b16 %v346, %v345
    %v356 = vpack.c.b16 %v348, %v347
    %vm357 = vcmask 64512
    %v359 = vsel %vm357, %v349, 0
    %v362 = vsel %vm357, %v350, 0
    %v365 = vsel %vm357, %v351, 0
    %v368 = vsel %vm357, %v352, 0
    %v371 = vsel %vm357, %v353, 0
    %v374 = vsel %vm357, %v354, 0
    %v377 = vsel %vm357, %v355, 0
    %v380 = vsel %vm357, %v356, 0
    %vm382 = vcmask 1043456
    %v384 = vsel %vm382, %v316, 0
    %386 = vmatprep.subr.bf16.mxu0 0
    %387 = vmatpush1.bf16.msra.mxu0 %v384
    %388 = vmatprep.subr.bf16.mxu0 0
    %389 = vmatpush1.bf16.msra.mxu0 0
    %390 = vmatprep.subr.bf16.mxu0 0
    %391 = vmatpush1.bf16.msra.mxu0 0
    %392 = vmatprep.subr.bf16.mxu0 0
    %393 = vmatpush1.bf16.msra.mxu0 0
    %394 = vmatprep.subr.bf16.mxu0 0
    %395 = vmatpush1.bf16.msra.mxu0 0
    %396 = vmatprep.subr.bf16.mxu0 0
    %397 = vmatpush1.bf16.msra.mxu0 0
    %398 = vmatprep.subr.bf16.mxu0 0
    %399 = vmatpush1.bf16.msra.mxu0 0
    %400 = vmatprep.subr.bf16.mxu0 0
    %401 = vmatpush1.bf16.msra.mxu0 0
    %402 = vmatprep.subr.bf16.mxu0 0
    %403 = vmatpush1.bf16.msra.mxu0 0
    %404 = vmatprep.subr.bf16.mxu0 0
    %405 = vmatpush1.bf16.msra.mxu0 0
    %406 = vmatprep.subr.bf16.mxu0 0
    %407 = vmatpush1.bf16.msra.mxu0 0
    %408 = vmatprep.subr.bf16.mxu0 0
    %409 = vmatpush1.bf16.msra.mxu0 0
    %410 = vmatprep.subr.bf16.mxu0 0
    %411 = vmatpush1.bf16.msra.mxu0 0
    %412 = vmatprep.subr.bf16.mxu0 0
    %413 = vmatpush1.bf16.msra.mxu0 0
    %414 = vmatprep.subr.bf16.mxu0 0
    %415 = vmatpush1.bf16.msra.mxu0 0
    %416 = vmatprep.subr.bf16.mxu0 0
    %417 = vmatpush1.bf16.msra.mxu0 0
    %418 = vmatprep.mubr.bf16.mxu0 0
    %419 = vmatmul.mubr.bf16.gmra.mrb[0].mxu0 %v359
    %v420 = vpop.f32.mrb[0].mxu0
    %v421 = vadd.f32 0.0, %v420
    %v422 = vpop.f32.mrb[0].mxu0
    %v423 = vpop.f32.mrb[0].mxu0
    %v424 = vadd.f32 0.0, %v423
    %v425 = vpop.f32.mrb[0].mxu0
    %426 = vmatprep.mubr.bf16.mxu0 0
    %427 = vmatmul.mubr.bf16.gmra.mrb[0].mxu0 %v362
    %v428 = vpop.f32.mrb[0].mxu0
    %v429 = vadd.f32 0.0, %v428
    %v430 = vpop.f32.mrb[0].mxu0
    %v431 = vpop.f32.mrb[0].mxu0
    %v432 = vadd.f32 0.0, %v431
    %v433 = vpop.f32.mrb[0].mxu0
    %434 = vmatprep.mubr.bf16.mxu0 0
    %435 = vmatmul.mubr.bf16.gmra.mrb[0].mxu0 %v365
    %v436 = vpop.f32.mrb[0].mxu0
    %v437 = vadd.f32 0.0, %v436
    %v438 = vpop.f32.mrb[0].mxu0
    %v439 = vpop.f32.mrb[0].mxu0
    %v440 = vadd.f32 0.0, %v439
    %v441 = vpop.f32.mrb[0].mxu0
    %442 = vmatprep.mubr.bf16.mxu0 0
    %443 = vmatmul.mubr.bf16.gmra.mrb[0].mxu0 %v368
    %v444 = vpop.f32.mrb[0].mxu0
    %v445 = vadd.f32 0.0, %v444
    %v446 = vpop.f32.mrb[0].mxu0
    %v447 = vpop.f32.mrb[0].mxu0
    %v448 = vadd.f32 0.0, %v447
    %v449 = vpop.f32.mrb[0].mxu0
    %450 = vmatprep.mubr.bf16.mxu0 0
    %451 = vmatmul.mubr.bf16.gmra.mrb[0].mxu0 %v371
    %v452 = vpop.f32.mrb[0].mxu0
    %v453 = vadd.f32 0.0, %v452
    %v454 = vpop.f32.mrb[0].mxu0
    %v455 = vpop.f32.mrb[0].mxu0
    %v456 = vadd.f32 0.0, %v455
    %v457 = vpop.f32.mrb[0].mxu0
    %458 = vmatprep.mubr.bf16.mxu0 0
    %459 = vmatmul.mubr.bf16.gmra.mrb[0].mxu0 %v374
    %v460 = vpop.f32.mrb[0].mxu0
    %v461 = vadd.f32 0.0, %v460
    %v462 = vpop.f32.mrb[0].mxu0
    %v463 = vpop.f32.mrb[0].mxu0
    %v464 = vadd.f32 0.0, %v463
    %v465 = vpop.f32.mrb[0].mxu0
    %466 = vmatprep.mubr.bf16.mxu0 0
    %467 = vmatmul.mubr.bf16.gmra.mrb[0].mxu0 %v377
    %v468 = vpop.f32.mrb[0].mxu0
    %v469 = vadd.f32 0.0, %v468
    %v470 = vpop.f32.mrb[0].mxu0
    %v471 = vpop.f32.mrb[0].mxu0
    %v472 = vadd.f32 0.0, %v471
    %v473 = vpop.f32.mrb[0].mxu0
    %474 = vmatprep.mubr.bf16.mxu0 0
    %475 = vmatmul.mubr.bf16.gmra.mrb[0].mxu0 %v380
    %v476 = vpop.f32.mrb[0].mxu0
    %v477 = vadd.f32 0.0, %v476
    %v478 = vpop.f32.mrb[0].mxu0
    %v479 = vpop.f32.mrb[0].mxu0
    %v480 = vadd.f32 0.0, %v479
    %v481 = vpop.f32.mrb[0].mxu0
    %482 = vdwg.mxu0
    %v483 = vld [vmem:[%s0] sm:$0xff]
    %v484 = vld [vmem:[%s0 + $0x8] sm:$0xff]
    %v485 = vld [vmem:[%s0 + $0x10] sm:$0xff]
    %v486 = vld [vmem:[%s0 + $0x18] sm:$0xff]
    %v487 = vld [vmem:[%s0 + $0x20] sm:$0xff]
    %v488 = vld [vmem:[%s0 + $0x28] sm:$0xff]
    %v489 = vld [vmem:[%s0 + $0x30] sm:$0xff]
    %v490 = vld [vmem:[%s0 + $0x38] sm:$0xff]
    %v491 = vld [vmem:[%s0 + $0x40] sm:$0xff]
    %v492 = vld [vmem:[%s0 + $0x48] sm:$0xff]
    %v493 = vld [vmem:[%s0 + $0x50] sm:$0xff]
    %v494 = vld [vmem:[%s0 + $0x58] sm:$0xff]
    %v495 = vld [vmem:[%s0 + $0x60] sm:$0xff]
    %v496 = vld [vmem:[%s0 + $0x68] sm:$0xff]
    %v497 = vld [vmem:[%s0 + $0x70] sm:$0xff]
    %v498 = vld [vmem:[%s0 + $0x78] sm:$0xff]
    %v499 = vmul.f32 %v483, %v421
    %v500 = vmul.f32 %v484, %v424
    %v501 = vmul.f32 %v485, %v429
    %v502 = vmul.f32 %v486, %v432
    %v503 = vmul.f32 %v487, %v437
    %v504 = vmul.f32 %v488, %v440
    %v505 = vmul.f32 %v489, %v445
    %v506 = vmul.f32 %v490, %v448
    %v507 = vmul.f32 %v491, %v453
    %v508 = vmul.f32 %v492, %v456
    %v509 = vmul.f32 %v493, %v461
    %v510 = vmul.f32 %v494, %v464
    %v511 = vmul.f32 %v495, %v469
    %v512 = vmul.f32 %v496, %v472
    %v513 = vmul.f32 %v497, %v477
    %v514 = vmul.f32 %v498, %v480
    %v515 = vld [vmem:[%s3] sm:$0xf]
    %v516 = vld [vmem:[%s3 + $0x4] sm:$0xf]
    %v517 = vld [vmem:[%s3 + $0x8] sm:$0xf]
    %v518 = vld [vmem:[%s3 + $0xc] sm:$0xf]
    %v519 = vld [vmem:[%s4] sm:$0x1]
    %v520 = vld [vmem:[#allocation5] sm:$0x1]
    %v521 = vld [vmem:[#allocation7] sm:$0x1]
    %v522 = vpack.c.bf16 %v500, %v499
    %v523 = vpack.c.bf16 %v502, %v501
    %v524 = vpack.c.bf16 %v504, %v503
    %v525 = vpack.c.bf16 %v506, %v505
    %v526 = vpack.c.bf16 %v508, %v507
    %v527 = vpack.c.bf16 %v510, %v509
    %v528 = vpack.c.bf16 %v512, %v511
    %v529 = vpack.c.bf16 %v514, %v513
    %v531 = vlaneseq
    %v532 = vshrl.u32 %v531, 7
    %v533 = vsub.s32 0, %v532
    %v534 = vrot.slane %v519, %v533
    %v540 = vunpack.c.l.b16 %v515
    %v541 = vunpack.c.l.b16 %v516
    %v542 = vunpack.c.l.b16 %v517
    %v543 = vunpack.c.l.b16 %v518
    %v544 = vpack.c.b16 %v541, %v540
    %v545 = vpack.c.b16 %v543, %v542
    %vm548 = vcmask 261120
    %v550 = vsel %vm548, %v522, 0
    %v553 = vsel %vm548, %v523, 0
    %v556 = vsel %vm548, %v524, 0
    %v559 = vsel %vm548, %v525, 0
    %v562 = vsel %vm548, %v526, 0
    %v565 = vsel %vm548, %v527, 0
    %v568 = vsel %vm548, %v528, 0
    %v571 = vsel %vm548, %v529, 0
    %573 = vmatprep.subr.bf16.mxu0 0
    %574 = vmatpush1.bf16.msra.mxu0 %v544
    %575 = vmatprep.subr.bf16.mxu0 0
    %576 = vmatpush1.bf16.msra.mxu0 %v545
    %577 = vmatprep.subr.bf16.mxu0 0
    %578 = vmatpush1.bf16.msra.mxu0 0
    %579 = vmatprep.subr.bf16.mxu0 0
    %580 = vmatpush1.bf16.msra.mxu0 0
    %581 = vmatprep.subr.bf16.mxu0 0
    %582 = vmatpush1.bf16.msra.mxu0 0
    %583 = vmatprep.subr.bf16.mxu0 0
    %584 = vmatpush1.bf16.msra.mxu0 0
    %585 = vmatprep.subr.bf16.mxu0 0
    %586 = vmatpush1.bf16.msra.mxu0 0
    %587 = vmatprep.subr.bf16.mxu0 0
    %588 = vmatpush1.bf16.msra.mxu0 0
    %589 = vmatprep.subr.bf16.mxu0 0
    %590 = vmatpush1.bf16.msra.mxu0 0
    %591 = vmatprep.subr.bf16.mxu0 0
    %592 = vmatpush1.bf16.msra.mxu0 0
    %593 = vmatprep.subr.bf16.mxu0 0
    %594 = vmatpush1.bf16.msra.mxu0 0
    %595 = vmatprep.subr.bf16.mxu0 0
    %596 = vmatpush1.bf16.msra.mxu0 0
    %597 = vmatprep.subr.bf16.mxu0 0
    %598 = vmatpush1.bf16.msra.mxu0 0
    %599 = vmatprep.subr.bf16.mxu0 0
    %600 = vmatpush1.bf16.msra.mxu0 0
    %601 = vmatprep.subr.bf16.mxu0 0
    %602 = vmatpush1.bf16.msra.mxu0 0
    %603 = vmatprep.subr.bf16.mxu0 0
    %604 = vmatpush1.bf16.msra.mxu0 0
    %605 = vmatprep.mubr.bf16.mxu0 0
    %606 = vmatmul.mubr.bf16.gmra.mrb[0].mxu0 %v550
    %v607 = vpop.f32.mrb[0].mxu0
    %v608 = vadd.f32 %v534, %v607
    %v609 = vpop.f32.mrb[0].mxu0
    %v610 = vpop.f32.mrb[0].mxu0
    %v611 = vadd.f32 %v534, %v610
    %v612 = vpop.f32.mrb[0].mxu0
    %613 = vmatprep.mubr.bf16.mxu0 0
    %614 = vmatmul.mubr.bf16.gmra.mrb[0].mxu0 %v553
    %v615 = vpop.f32.mrb[0].mxu0
    %v616 = vadd.f32 %v534, %v615
    %v617 = vpop.f32.mrb[0].mxu0
    %v618 = vpop.f32.mrb[0].mxu0
    %v619 = vadd.f32 %v534, %v618
    %v620 = vpop.f32.mrb[0].mxu0
    %621 = vmatprep.mubr.bf16.mxu0 0
    %622 = vmatmul.mubr.bf16.gmra.mrb[0].mxu0 %v556
    %v623 = vpop.f32.mrb[0].mxu0
    %v624 = vadd.f32 %v534, %v623
    %v625 = vpop.f32.mrb[0].mxu0
    %v626 = vpop.f32.mrb[0].mxu0
    %v627 = vadd.f32 %v534, %v626
    %v628 = vpop.f32.mrb[0].mxu0
    %629 = vmatprep.mubr.bf16.mxu0 0
    %630 = vmatmul.mubr.bf16.gmra.mrb[0].mxu0 %v559
    %v631 = vpop.f32.mrb[0].mxu0
    %v632 = vadd.f32 %v534, %v631
    %v633 = vpop.f32.mrb[0].mxu0
    %v634 = vpop.f32.mrb[0].mxu0
    %v635 = vadd.f32 %v534, %v634
    %v636 = vpop.f32.mrb[0].mxu0
    %637 = vmatprep.mubr.bf16.mxu0 0
    %638 = vmatmul.mubr.bf16.gmra.mrb[0].mxu0 %v562
    %v639 = vpop.f32.mrb[0].mxu0
    %v640 = vadd.f32 %v534, %v639
    %v641 = vpop.f32.mrb[0].mxu0
    %v642 = vpop.f32.mrb[0].mxu0
    %v643 = vadd.f32 %v534, %v642
    %v644 = vpop.f32.mrb[0].mxu0
    %645 = vmatprep.mubr.bf16.mxu0 0
    %646 = vmatmul.mubr.bf16.gmra.mrb[0].mxu0 %v565
    %v647 = vpop.f32.mrb[0].mxu0
    %v648 = vadd.f32 %v534, %v647
    %v649 = vpop.f32.mrb[0].mxu0
    %v650 = vpop.f32.mrb[0].mxu0
    %v651 = vadd.f32 %v534, %v650
    %v652 = vpop.f32.mrb[0].mxu0
    %653 = vmatprep.mubr.bf16.mxu0 0
    %654 = vmatmul.mubr.bf16.gmra.mrb[0].mxu0 %v568
    %v655 = vpop.f32.mrb[0].mxu0
    %v656 = vadd.f32 %v534, %v655
    %v657 = vpop.f32.mrb[0].mxu0
    %v658 = vpop.f32.mrb[0].mxu0
    %v659 = vadd.f32 %v534, %v658
    %v660 = vpop.f32.mrb[0].mxu0
    %661 = vmatprep.mubr.bf16.mxu0 0
    %662 = vmatmul.mubr.bf16.gmra.mrb[0].mxu0 %v571
    %v663 = vpop.f32.mrb[0].mxu0
    %v664 = vadd.f32 %v534, %v663
    %v665 = vpop.f32.mrb[0].mxu0
    %v666 = vpop.f32.mrb[0].mxu0
    %v667 = vadd.f32 %v534, %v666
    %v668 = vpop.f32.mrb[0].mxu0
    %669 = vdwg.mxu0
    %vm670 = vcmp.gt.f32.partialorder %v608, 0.0
    %vm671 = vcmp.gt.f32.partialorder %v611, 0.0
    %vm672 = vcmp.gt.f32.partialorder %v616, 0.0
    %vm673 = vcmp.gt.f32.partialorder %v619, 0.0
    %vm674 = vcmp.gt.f32.partialorder %v624, 0.0
    %vm675 = vcmp.gt.f32.partialorder %v627, 0.0
    %vm676 = vcmp.gt.f32.partialorder %v632, 0.0
    %vm677 = vcmp.gt.f32.partialorder %v635, 0.0
    %vm678 = vcmp.gt.f32.partialorder %v640, 0.0
    %vm679 = vcmp.gt.f32.partialorder %v643, 0.0
    %vm680 = vcmp.gt.f32.partialorder %v648, 0.0
    %vm681 = vcmp.gt.f32.partialorder %v651, 0.0
    %vm682 = vcmp.gt.f32.partialorder %v656, 0.0
    %vm683 = vcmp.gt.f32.partialorder %v659, 0.0
    %vm684 = vcmp.gt.f32.partialorder %v664, 0.0
    %vm685 = vcmp.gt.f32.partialorder %v667, 0.0
    %v686 = vmul.f32 %v608, 0.2
    %v687 = vmul.f32 %v611, 0.2
    %v688 = vmul.f32 %v616, 0.2
    %v689 = vmul.f32 %v619, 0.2
    %v690 = vmul.f32 %v624, 0.2
    %v691 = vmul.f32 %v627, 0.2
    %v692 = vmul.f32 %v632, 0.2
    %v693 = vmul.f32 %v635, 0.2
    %v694 = vmul.f32 %v640, 0.2
    %v695 = vmul.f32 %v643, 0.2
    %v696 = vmul.f32 %v648, 0.2
    %v697 = vmul.f32 %v651, 0.2
    %v698 = vmul.f32 %v656, 0.2
    %v699 = vmul.f32 %v659, 0.2
    %v700 = vmul.f32 %v664, 0.2
    %v701 = vmul.f32 %v667, 0.2
    %v702 = vsel %vm670, %v608, %v686
    %v703 = vsel %vm671, %v611, %v687
    %v704 = vsel %vm672, %v616, %v688
    %v705 = vsel %vm673, %v619, %v689
    %v706 = vsel %vm674, %v624, %v690
    %v707 = vsel %vm675, %v627, %v691
    %v708 = vsel %vm676, %v632, %v692
    %v709 = vsel %vm677, %v635, %v693
    %v710 = vsel %vm678, %v640, %v694
    %v711 = vsel %vm679, %v643, %v695
    %v712 = vsel %vm680, %v648, %v696
    %v713 = vsel %vm681, %v651, %v697
    %v714 = vsel %vm682, %v656, %v698
    %v715 = vsel %vm683, %v659, %v699
    %v716 = vsel %vm684, %v664, %v700
    %v717 = vsel %vm685, %v667, %v701
    %v718 = vadd.f32 %v702, %v703
    %v719 = vadd.f32 %v718, %v704
    %v720 = vadd.f32 %v719, %v705
    %v721 = vadd.f32 %v720, %v706
    %v722 = vadd.f32 %v721, %v707
    %v723 = vadd.f32 %v722, %v708
    %v724 = vadd.f32 %v723, %v709
    %v725 = vadd.f32 %v724, %v710
    %v726 = vadd.f32 %v725, %v711
    %v727 = vadd.f32 %v726, %v712
    %v728 = vadd.f32 %v727, %v713
    %v729 = vadd.f32 %v728, %v714
    %v730 = vadd.f32 %v729, %v715
    %v731 = vadd.f32 %v730, %v716
    %v732 = vadd.f32 %v731, %v717
    %v733 = vrot.slane %v732, 4
    %v734 = vadd.f32 %v732, %v733
    %v735 = vrot.slane %v734, 2
    %v736 = vadd.f32 %v734, %v735
    %v737 = vrot.slane %v736, 1
    %v738 = vadd.f32 %v736, %v737
    %v739 = vmul.f32 %v738, 0.0078125
    %v740 = vmul.f32 %v702, %v702
    %v741 = vmul.f32 %v703, %v703
    %v742 = vmul.f32 %v704, %v704
    %v743 = vmul.f32 %v705, %v705
    %v744 = vmul.f32 %v706, %v706
    %v745 = vmul.f32 %v707, %v707
    %v746 = vmul.f32 %v708, %v708
    %v747 = vmul.f32 %v709, %v709
    %v748 = vmul.f32 %v710, %v710
    %v749 = vmul.f32 %v711, %v711
    %v750 = vmul.f32 %v712, %v712
    %v751 = vmul.f32 %v713, %v713
    %v752 = vmul.f32 %v714, %v714
    %v753 = vmul.f32 %v715, %v715
    %v754 = vmul.f32 %v716, %v716
    %v755 = vmul.f32 %v717, %v717
    %v756 = vadd.f32 %v740, %v741
    %v757 = vadd.f32 %v756, %v742
    %v758 = vadd.f32 %v757, %v743
    %v759 = vadd.f32 %v758, %v744
    %v760 = vadd.f32 %v759, %v745
    %v761 = vadd.f32 %v760, %v746
    %v762 = vadd.f32 %v761, %v747
    %v763 = vadd.f32 %v762, %v748
    %v764 = vadd.f32 %v763, %v749
    %v765 = vadd.f32 %v764, %v750
    %v766 = vadd.f32 %v765, %v751
    %v767 = vadd.f32 %v766, %v752
    %v768 = vadd.f32 %v767, %v753
    %v769 = vadd.f32 %v768, %v754
    %v770 = vadd.f32 %v769, %v755
    %v771 = vrot.slane %v770, 4
    %v772 = vadd.f32 %v770, %v771
    %v773 = vrot.slane %v772, 2
    %v774 = vadd.f32 %v772, %v773
    %v775 = vrot.slane %v774, 1
    %v776 = vadd.f32 %v774, %v775
    %v777 = vmul.f32 %v776, 0.0078125
    %v778 = vmul.f32 %v739, %v739
    %v779 = vsub.f32 %v777, %v778
    %v780 = vmax.f32 %v779, 0.0
    %v781 = vadd.f32 %v780, 1e-05
    %v782 = vrsqrt.pop %v781
    %v783 = vmul.f32 %v520, %v782
    %v784 = vmul.f32 %v739, %v783
    %v785 = vsub.f32 %v521, %v784
    %v787 = vlaneseq
    %v788 = vshrl.u32 %v787, 7
    %v789 = vsub.s32 0, %v788
    %v790 = vrot.slane %v783, %v789
    %v792 = vmul.f32 %v702, %v790
    %v793 = vmul.f32 %v703, %v790
    %v794 = vmul.f32 %v704, %v790
    %v795 = vmul.f32 %v705, %v790
    %v796 = vmul.f32 %v706, %v790
    %v797 = vmul.f32 %v707, %v790
    %v798 = vmul.f32 %v708, %v790
    %v799 = vmul.f32 %v709, %v790
    %v800 = vmul.f32 %v710, %v790
    %v801 = vmul.f32 %v711, %v790
    %v802 = vmul.f32 %v712, %v790
    %v803 = vmul.f32 %v713, %v790
    %v804 = vmul.f32 %v714, %v790
    %v805 = vmul.f32 %v715, %v790
    %v806 = vmul.f32 %v716, %v790
    %v807 = vmul.f32 %v717, %v790
    %v809 = vlaneseq
    %v810 = vshrl.u32 %v809, 7
    %v811 = vsub.s32 0, %v810
    %v812 = vrot.slane %v785, %v811
    %v814 = vadd.f32 %v792, %v812
    %v815 = vadd.f32 %v793, %v812
    %v816 = vadd.f32 %v794, %v812
    %v817 = vadd.f32 %v795, %v812
    %v818 = vadd.f32 %v796, %v812
    %v819 = vadd.f32 %v797, %v812
    %v820 = vadd.f32 %v798, %v812
    %v821 = vadd.f32 %v799, %v812
    %v822 = vadd.f32 %v800, %v812
    %v823 = vadd.f32 %v801, %v812
    %v824 = vadd.f32 %v802, %v812
    %v825 = vadd.f32 %v803, %v812
    %v826 = vadd.f32 %v804, %v812
    %v827 = vadd.f32 %v805, %v812
    %v828 = vadd.f32 %v806, %v812
    %v829 = vadd.f32 %v807, %v812
    %v830 = vpack.c.bf16 %v815, %v814
    %v831 = vpack.c.bf16 %v817, %v816
    %v832 = vpack.c.bf16 %v819, %v818
    %v833 = vpack.c.bf16 %v821, %v820
    %v834 = vpack.c.bf16 %v823, %v822
    %v835 = vpack.c.bf16 %v825, %v824
    %v836 = vpack.c.bf16 %v827, %v826
    %v837 = vpack.c.bf16 %v829, %v828
    %v838 = vld [vmem:[#allocation9] sm:$0xff]
    %v839 = vld [vmem:[#allocation9 + $0x8] sm:$0xff]
    %v840 = vld [vmem:[#allocation9 + $0x10] sm:$0xff]
    %v841 = vld [vmem:[#allocation9 + $0x18] sm:$0xff]
    %v842 = vld [vmem:[#allocation9 + $0x20] sm:$0xff]
    %v843 = vld [vmem:[#allocation9 + $0x28] sm:$0xff]
    %v844 = vld [vmem:[#allocation9 + $0x30] sm:$0xff]
    %v845 = vld [vmem:[#allocation9 + $0x38] sm:$0xff]
    %v846 = vld [vmem:[#allocation9 + $0x40] sm:$0xff]
    %v847 = vld [vmem:[#allocation9 + $0x48] sm:$0xff]
    %v848 = vld [vmem:[#allocation9 + $0x50] sm:$0xff]
    %v849 = vld [vmem:[#allocation9 + $0x58] sm:$0xff]
    %v850 = vld [vmem:[#allocation9 + $0x60] sm:$0xff]
    %v851 = vld [vmem:[#allocation9 + $0x68] sm:$0xff]
    %v852 = vld [vmem:[#allocation9 + $0x70] sm:$0xff]
    %v853 = vld [vmem:[#allocation9 + $0x78] sm:$0xff]
    %v854 = vld [vmem:[#allocation10] sm:$0x3]
    %v855 = vld [vmem:[#allocation12] sm:$0x3]
    %v856 = vld [vmem:[#allocation13] sm:$0x3]
    %v858 = vlaneseq
    %v859 = vshrl.u32 %v858, 7
    %v860 = vsub.s32 0, %v859
    %v861 = vrot.slane %v854, %v860
    %v862 = vlaneseq
    %v863 = vshrl.u32 %v862, 7
    %v864 = vsub.s32 1, %v863
    %v865 = vrot.slane %v854, %v864
    %v884 = vunpack.c.l.b16 %v838
    %v885 = vunpack.c.h.b16 %v838
    %v886 = vunpack.c.l.b16 %v839
    %v887 = vunpack.c.h.b16 %v839
    %v888 = vunpack.c.l.b16 %v840
    %v889 = vunpack.c.h.b16 %v840
    %v890 = vunpack.c.l.b16 %v841
    %v891 = vunpack.c.h.b16 %v841
    %v892 = vunpack.c.l.b16 %v842
    %v893 = vunpack.c.h.b16 %v842
    %v894 = vunpack.c.l.b16 %v843
    %v895 = vunpack.c.h.b16 %v843
    %v896 = vunpack.c.l.b16 %v844
    %v897 = vunpack.c.h.b16 %v844
    %v898 = vunpack.c.l.b16 %v845
    %v899 = vunpack.c.h.b16 %v845
    %v900 = vunpack.c.l.b16 %v846
    %v901 = vunpack.c.h.b16 %v846
    %v902 = vunpack.c.l.b16 %v847
    %v903 = vunpack.c.h.b16 %v847
    %v904 = vunpack.c.l.b16 %v848
    %v905 = vunpack.c.h.b16 %v848
    %v906 = vunpack.c.l.b16 %v849
    %v907 = vunpack.c.h.b16 %v849
    %v908 = vunpack.c.l.b16 %v850
    %v909 = vunpack.c.h.b16 %v850
    %v910 = vunpack.c.l.b16 %v851
    %v911 = vunpack.c.h.b16 %v851
    %v912 = vunpack.c.l.b16 %v852
    %v913 = vunpack.c.h.b16 %v852
    %v914 = vunpack.c.l.b16 %v853
    %v915 = vunpack.c.h.b16 %v853
    %v916 = vpack.c.b16 %v886, %v884
    %v917 = vpack.c.b16 %v887, %v885
    %v918 = vpack.c.b16 %v890, %v888
    %v919 = vpack.c.b16 %v891, %v889
    %v920 = vpack.c.b16 %v894, %v892
    %v921 = vpack.c.b16 %v895, %v893
    %v922 = vpack.c.b16 %v898, %v896
    %v923 = vpack.c.b16 %v899, %v897
    %v924 = vpack.c.b16 %v902, %v900
    %v925 = vpack.c.b16 %v903, %v901
    %v926 = vpack.c.b16 %v906, %v904
    %v927 = vpack.c.b16 %v907, %v905
    %v928 = vpack.c.b16 %v910, %v908
    %v929 = vpack.c.b16 %v911, %v909
    %v930 = vpack.c.b16 %v914, %v912
    %v931 = vpack.c.b16 %v915, %v913
    %948 = vmatprep.subr.bf16.mxu0 %v917
    %949 = vmatpush1.bf16.msra.mxu0 %v916
    %950 = vmatprep.subr.bf16.mxu0 %v919
    %951 = vmatpush1.bf16.msra.mxu0 %v918
    %952 = vmatprep.subr.bf16.mxu0 %v921
    %953 = vmatpush1.bf16.msra.mxu0 %v920
    %954 = vmatprep.subr.bf16.mxu0 %v923
    %955 = vmatpush1.bf16.msra.mxu0 %v922
    %956 = vmatprep.subr.bf16.mxu0 %v925
    %957 = vmatpush1.bf16.msra.mxu0 %v924
    %958 = vmatprep.subr.bf16.mxu0 %v927
    %959 = vmatpush1.bf16.msra.mxu0 %v926
    %960 = vmatprep.subr.bf16.mxu0 %v929
    %961 = vmatpush1.bf16.msra.mxu0 %v928
    %962 = vmatprep.subr.bf16.mxu0 %v931
    %963 = vmatpush1.bf16.msra.mxu0 %v930
    %964 = vmatprep.subr.bf16.mxu0 0
    %965 = vmatpush1.bf16.msra.mxu0 0
    %966 = vmatprep.subr.bf16.mxu0 0
    %967 = vmatpush1.bf16.msra.mxu0 0
    %968 = vmatprep.subr.bf16.mxu0 0
    %969 = vmatpush1.bf16.msra.mxu0 0
    %970 = vmatprep.subr.bf16.mxu0 0
    %971 = vmatpush1.bf16.msra.mxu0 0
    %972 = vmatprep.subr.bf16.mxu0 0
    %973 = vmatpush1.bf16.msra.mxu0 0
    %974 = vmatprep.subr.bf16.mxu0 0
    %975 = vmatpush1.bf16.msra.mxu0 0
    %976 = vmatprep.subr.bf16.mxu0 0
    %977 = vmatpush1.bf16.msra.mxu0 0
    %978 = vmatprep.subr.bf16.mxu0 0
    %979 = vmatpush1.bf16.msra.mxu0 0
    %980 = vmatprep.mubr.bf16.mxu0 0
    %981 = vmatmul.mubr.bf16.gmra.mrb[0].mxu0 %v830
    %v982 = vpop.f32.mrb[0].mxu0
    %v983 = vadd.f32 %v861, %v982
    %v984 = vpop.f32.mrb[0].mxu0
    %v985 = vadd.f32 %v865, %v984
    %v986 = vpop.f32.mrb[0].mxu0
    %v987 = vadd.f32 %v861, %v986
    %v988 = vpop.f32.mrb[0].mxu0
    %v989 = vadd.f32 %v865, %v988
    %990 = vmatprep.mubr.bf16.mxu0 0
    %991 = vmatmul.mubr.bf16.gmra.mrb[0].mxu0 %v831
    %v992 = vpop.f32.mrb[0].mxu0
    %v993 = vadd.f32 %v861, %v992
    %v994 = vpop.f32.mrb[0].mxu0
    %v995 = vadd.f32 %v865, %v994
    %v996 = vpop.f32.mrb[0].mxu0
    %v997 = vadd.f32 %v861, %v996
    %v998 = vpop.f32.mrb[0].mxu0
    %v999 = vadd.f32 %v865, %v998
    %1000 = vmatprep.mubr.bf16.mxu0 0
    %1001 = vmatmul.mubr.bf16.gmra.mrb[0].mxu0 %v832
    %v1002 = vpop.f32.mrb[0].mxu0
    %v1003 = vadd.f32 %v861, %v1002
    %v1004 = vpop.f32.mrb[0].mxu0
    %v1005 = vadd.f32 %v865, %v1004
    %v1006 = vpop.f32.mrb[0].mxu0
    %v1007 = vadd.f32 %v861, %v1006
    %v1008 = vpop.f32.mrb[0].mxu0
    %v1009 = vadd.f32 %v865, %v1008
    %1010 = vmatprep.mubr.bf16.mxu0 0
    %1011 = vmatmul.mubr.bf16.gmra.mrb[0].mxu0 %v833
    %v1012 = vpop.f32.mrb[0].mxu0
    %v1013 = vadd.f32 %v861, %v1012
    %v1014 = vpop.f32.mrb[0].mxu0
    %v1015 = vadd.f32 %v865, %v1014
    %v1016 = vpop.f32.mrb[0].mxu0
    %v1017 = vadd.f32 %v861, %v1016
    %v1018 = vpop.f32.mrb[0].mxu0
    %v1019 = vadd.f32 %v865, %v1018
    %1020 = vmatprep.mubr.bf16.mxu0 0
    %1021 = vmatmul.mubr.bf16.gmra.mrb[0].mxu0 %v834
    %v1022 = vpop.f32.mrb[0].mxu0
    %v1023 = vadd.f32 %v861, %v1022
    %v1024 = vpop.f32.mrb[0].mxu0
    %v1025 = vadd.f32 %v865, %v1024
    %v1026 = vpop.f32.mrb[0].mxu0
    %v1027 = vadd.f32 %v861, %v1026
    %v1028 = vpop.f32.mrb[0].mxu0
    %v1029 = vadd.f32 %v865, %v1028
    %1030 = vmatprep.mubr.bf16.mxu0 0
    %1031 = vmatmul.mubr.bf16.gmra.mrb[0].mxu0 %v835
    %v1032 = vpop.f32.mrb[0].mxu0
    %v1033 = vadd.f32 %v861, %v1032
    %v1034 = vpop.f32.mrb[0].mxu0
    %v1035 = vadd.f32 %v865, %v1034
    %v1036 = vpop.f32.mrb[0].mxu0
    %v1037 = vadd.f32 %v861, %v1036
    %v1038 = vpop.f32.mrb[0].mxu0
    %v1039 = vadd.f32 %v865, %v1038
    %1040 = vmatprep.mubr.bf16.mxu0 0
    %1041 = vmatmul.mubr.bf16.gmra.mrb[0].mxu0 %v836
    %v1042 = vpop.f32.mrb[0].mxu0
    %v1043 = vadd.f32 %v861, %v1042
    %v1044 = vpop.f32.mrb[0].mxu0
    %v1045 = vadd.f32 %v865, %v1044
    %v1046 = vpop.f32.mrb[0].mxu0
    %v1047 = vadd.f32 %v861, %v1046
    %v1048 = vpop.f32.mrb[0].mxu0
    %v1049 = vadd.f32 %v865, %v1048
    %1050 = vmatprep.mubr.bf16.mxu0 0
    %1051 = vmatmul.mubr.bf16.gmra.mrb[0].mxu0 %v837
    %v1052 = vpop.f32.mrb[0].mxu0
    %v1053 = vadd.f32 %v861, %v1052
    %v1054 = vpop.f32.mrb[0].mxu0
    %v1055 = vadd.f32 %v865, %v1054
    %v1056 = vpop.f32.mrb[0].mxu0
    %v1057 = vadd.f32 %v861, %v1056
    %v1058 = vpop.f32.mrb[0].mxu0
    %v1059 = vadd.f32 %v865, %v1058
    %1060 = vdwg.mxu0
    %vm1061 = vcmp.gt.f32.partialorder %v983, 0.0
    %vm1062 = vcmp.gt.f32.partialorder %v985, 0.0
    %vm1063 = vcmp.gt.f32.partialorder %v987, 0.0
    %vm1064 = vcmp.gt.f32.partialorder %v989, 0.0
    %vm1065 = vcmp.gt.f32.partialorder %v993, 0.0
    %vm1066 = vcmp.gt.f32.partialorder %v995, 0.0
    %vm1067 = vcmp.gt.f32.partialorder %v997, 0.0
    %vm1068 = vcmp.gt.f32.partialorder %v999, 0.0
    %vm1069 = vcmp.gt.f32.partialorder %v1003, 0.0
    %vm1070 = vcmp.gt.f32.partialorder %v1005, 0.0
    %vm1071 = vcmp.gt.f32.partialorder %v1007, 0.0
    %vm1072 = vcmp.gt.f32.partialorder %v1009, 0.0
    %vm1073 = vcmp.gt.f32.partialorder %v1013, 0.0
    %vm1074 = vcmp.gt.f32.partialorder %v1015, 0.0
    %vm1075 = vcmp.gt.f32.partialorder %v1017, 0.0
    %vm1076 = vcmp.gt.f32.partialorder %v1019, 0.0
    %vm1077 = vcmp.gt.f32.partialorder %v1023, 0.0
    %vm1078 = vcmp.gt.f32.partialorder %v1025, 0.0
    %vm1079 = vcmp.gt.f32.partialorder %v1027, 0.0
    %vm1080 = vcmp.gt.f32.partialorder %v1029, 0.0
    %vm1081 = vcmp.gt.f32.partialorder %v1033, 0.0
    %vm1082 = vcmp.gt.f32.partialorder %v1035, 0.0
    %vm1083 = vcmp.gt.f32.partialorder %v1037, 0.0
    %vm1084 = vcmp.gt.f32.partialorder %v1039, 0.0
    %vm1085 = vcmp.gt.f32.partialorder %v1043, 0.0
    %vm1086 = vcmp.gt.f32.partialorder %v1045, 0.0
    %vm1087 = vcmp.gt.f32.partialorder %v1047, 0.0
    %vm1088 = vcmp.gt.f32.partialorder %v1049, 0.0
    %vm1089 = vcmp.gt.f32.partialorder %v1053, 0.0
    %vm1090 = vcmp.gt.f32.partialorder %v1055, 0.0
    %vm1091 = vcmp.gt.f32.partialorder %v1057, 0.0
    %vm1092 = vcmp.gt.f32.partialorder %v1059, 0.0
    %v1093 = vmul.f32 %v983, 0.2
    %v1094 = vmul.f32 %v985, 0.2
    %v1095 = vmul.f32 %v987, 0.2
    %v1096 = vmul.f32 %v989, 0.2
    %v1097 = vmul.f32 %v993, 0.2
    %v1098 = vmul.f32 %v995, 0.2
    %v1099 = vmul.f32 %v997, 0.2
    %v1100 = vmul.f32 %v999, 0.2
    %v1101 = vmul.f32 %v1003, 0.2
    %v1102 = vmul.f32 %v1005, 0.2
    %v1103 = vmul.f32 %v1007, 0.2
    %v1104 = vmul.f32 %v1009, 0.2
    %v1105 = vmul.f32 %v1013, 0.2
    %v1106 = vmul.f32 %v1015, 0.2
    %v1107 = vmul.f32 %v1017, 0.2
    %v1108 = vmul.f32 %v1019, 0.2
    %v1109 = vmul.f32 %v1023, 0.2
    %v1110 = vmul.f32 %v1025, 0.2
    %v1111 = vmul.f32 %v1027, 0.2
    %v1112 = vmul.f32 %v1029, 0.2
    %v1113 = vmul.f32 %v1033, 0.2
    %v1114 = vmul.f32 %v1035, 0.2
    %v1115 = vmul.f32 %v1037, 0.2
    %v1116 = vmul.f32 %v1039, 0.2
    %v1117 = vmul.f32 %v1043, 0.2
    %v1118 = vmul.f32 %v1045, 0.2
    %v1119 = vmul.f32 %v1047, 0.2
    %v1120 = vmul.f32 %v1049, 0.2
    %v1121 = vmul.f32 %v1053, 0.2
    %v1122 = vmul.f32 %v1055, 0.2
    %v1123 = vmul.f32 %v1057, 0.2
    %v1124 = vmul.f32 %v1059, 0.2
    %v1125 = vsel %vm1061, %v983, %v1093
    %v1126 = vsel %vm1062, %v985, %v1094
    %v1127 = vsel %vm1063, %v987, %v1095
    %v1128 = vsel %vm1064, %v989, %v1096
    %v1129 = vsel %vm1065, %v993, %v1097
    %v1130 = vsel %vm1066, %v995, %v1098
    %v1131 = vsel %vm1067, %v997, %v1099
    %v1132 = vsel %vm1068, %v999, %v1100
    %v1133 = vsel %vm1069, %v1003, %v1101
    %v1134 = vsel %vm1070, %v1005, %v1102
    %v1135 = vsel %vm1071, %v1007, %v1103
    %v1136 = vsel %vm1072, %v1009, %v1104
    %v1137 = vsel %vm1073, %v1013, %v1105
    %v1138 = vsel %vm1074, %v1015, %v1106
    %v1139 = vsel %vm1075, %v1017, %v1107
    %v1140 = vsel %vm1076, %v1019, %v1108
    %v1141 = vsel %vm1077, %v1023, %v1109
    %v1142 = vsel %vm1078, %v1025, %v1110
    %v1143 = vsel %vm1079, %v1027, %v1111
    %v1144 = vsel %vm1080, %v1029, %v1112
    %v1145 = vsel %vm1081, %v1033, %v1113
    %v1146 = vsel %vm1082, %v1035, %v1114
    %v1147 = vsel %vm1083, %v1037, %v1115
    %v1148 = vsel %vm1084, %v1039, %v1116
    %v1149 = vsel %vm1085, %v1043, %v1117
    %v1150 = vsel %vm1086, %v1045, %v1118
    %v1151 = vsel %vm1087, %v1047, %v1119
    %v1152 = vsel %vm1088, %v1049, %v1120
    %v1153 = vsel %vm1089, %v1053, %v1121
    %v1154 = vsel %vm1090, %v1055, %v1122
    %v1155 = vsel %vm1091, %v1057, %v1123
    %v1156 = vsel %vm1092, %v1059, %v1124
    %v1157 = vadd.f32 %v1125, %v1127
    %v1158 = vadd.f32 %v1157, %v1129
    %v1159 = vadd.f32 %v1158, %v1131
    %v1160 = vadd.f32 %v1159, %v1133
    %v1161 = vadd.f32 %v1160, %v1135
    %v1162 = vadd.f32 %v1161, %v1137
    %v1163 = vadd.f32 %v1162, %v1139
    %v1164 = vadd.f32 %v1163, %v1141
    %v1165 = vadd.f32 %v1164, %v1143
    %v1166 = vadd.f32 %v1165, %v1145
    %v1167 = vadd.f32 %v1166, %v1147
    %v1168 = vadd.f32 %v1167, %v1149
    %v1169 = vadd.f32 %v1168, %v1151
    %v1170 = vadd.f32 %v1169, %v1153
    %v1171 = vadd.f32 %v1170, %v1155
    %v1172 = vrot.slane %v1171, 4
    %v1173 = vadd.f32 %v1171, %v1172
    %v1174 = vrot.slane %v1173, 2
    %v1175 = vadd.f32 %v1173, %v1174
    %v1176 = vrot.slane %v1175, 1
    %v1177 = vadd.f32 %v1175, %v1176
    %v1178 = vadd.f32 %v1126, %v1128
    %v1179 = vadd.f32 %v1178, %v1130
    %v1180 = vadd.f32 %v1179, %v1132
    %v1181 = vadd.f32 %v1180, %v1134
    %v1182 = vadd.f32 %v1181, %v1136
    %v1183 = vadd.f32 %v1182, %v1138
    %v1184 = vadd.f32 %v1183, %v1140
    %v1185 = vadd.f32 %v1184, %v1142
    %v1186 = vadd.f32 %v1185, %v1144
    %v1187 = vadd.f32 %v1186, %v1146
    %v1188 = vadd.f32 %v1187, %v1148
    %v1189 = vadd.f32 %v1188, %v1150
    %v1190 = vadd.f32 %v1189, %v1152
    %v1191 = vadd.f32 %v1190, %v1154
    %v1192 = vadd.f32 %v1191, %v1156
    %v1193 = vrot.slane %v1192, 4
    %v1194 = vadd.f32 %v1192, %v1193
    %v1195 = vrot.slane %v1194, 2
    %v1196 = vadd.f32 %v1194, %v1195
    %v1197 = vrot.slane %v1196, 1
    %v1198 = vadd.f32 %v1196, %v1197
    %v1199 = vmul.f32 %v1177, 0.0078125
    %v1200 = vmul.f32 %v1198, 0.0078125
    %v1201 = vmul.f32 %v1125, %v1125
    %v1202 = vmul.f32 %v1126, %v1126
    %v1203 = vmul.f32 %v1127, %v1127
    %v1204 = vmul.f32 %v1128, %v1128
    %v1205 = vmul.f32 %v1129, %v1129
    %v1206 = vmul.f32 %v1130, %v1130
    %v1207 = vmul.f32 %v1131, %v1131
    %v1208 = vmul.f32 %v1132, %v1132
    %v1209 = vmul.f32 %v1133, %v1133
    %v1210 = vmul.f32 %v1134, %v1134
    %v1211 = vmul.f32 %v1135, %v1135
    %v1212 = vmul.f32 %v1136, %v1136
    %v1213 = vmul.f32 %v1137, %v1137
    %v1214 = vmul.f32 %v1138, %v1138
    %v1215 = vmul.f32 %v1139, %v1139
    %v1216 = vmul.f32 %v1140, %v1140
    %v1217 = vmul.f32 %v1141, %v1141
    %v1218 = vmul.f32 %v1142, %v1142
    %v1219 = vmul.f32 %v1143, %v1143
    %v1220 = vmul.f32 %v1144, %v1144
    %v1221 = vmul.f32 %v1145, %v1145
    %v1222 = vmul.f32 %v1146, %v1146
    %v1223 = vmul.f32 %v1147, %v1147
    %v1224 = vmul.f32 %v1148, %v1148
    %v1225 = vmul.f32 %v1149, %v1149
    %v1226 = vmul.f32 %v1150, %v1150
    %v1227 = vmul.f32 %v1151, %v1151
    %v1228 = vmul.f32 %v1152, %v1152
    %v1229 = vmul.f32 %v1153, %v1153
    %v1230 = vmul.f32 %v1154, %v1154
    %v1231 = vmul.f32 %v1155, %v1155
    %v1232 = vmul.f32 %v1156, %v1156
    %v1233 = vadd.f32 %v1201, %v1203
    %v1234 = vadd.f32 %v1233, %v1205
    %v1235 = vadd.f32 %v1234, %v1207
    %v1236 = vadd.f32 %v1235, %v1209
    %v1237 = vadd.f32 %v1236, %v1211
    %v1238 = vadd.f32 %v1237, %v1213
    %v1239 = vadd.f32 %v1238, %v1215
    %v1240 = vadd.f32 %v1239, %v1217
    %v1241 = vadd.f32 %v1240, %v1219
    %v1242 = vadd.f32 %v1241, %v1221
    %v1243 = vadd.f32 %v1242, %v1223
    %v1244 = vadd.f32 %v1243, %v1225
    %v1245 = vadd.f32 %v1244, %v1227
    %v1246 = vadd.f32 %v1245, %v1229
    %v1247 = vadd.f32 %v1246, %v1231
    %v1248 = vrot.slane %v1247, 4
    %v1249 = vadd.f32 %v1247, %v1248
    %v1250 = vrot.slane %v1249, 2
    %v1251 = vadd.f32 %v1249, %v1250
    %v1252 = vrot.slane %v1251, 1
    %v1253 = vadd.f32 %v1251, %v1252
    %v1254 = vadd.f32 %v1202, %v1204
    %v1255 = vadd.f32 %v1254, %v1206
    %v1256 = vadd.f32 %v1255, %v1208
    %v1257 = vadd.f32 %v1256, %v1210
    %v1258 = vadd.f32 %v1257, %v1212
    %v1259 = vadd.f32 %v1258, %v1214
    %v1260 = vadd.f32 %v1259, %v1216
    %v1261 = vadd.f32 %v1260, %v1218
    %v1262 = vadd.f32 %v1261, %v1220
    %v1263 = vadd.f32 %v1262, %v1222
    %v1264 = vadd.f32 %v1263, %v1224
    %v1265 = vadd.f32 %v1264, %v1226
    %v1266 = vadd.f32 %v1265, %v1228
    %v1267 = vadd.f32 %v1266, %v1230
    %v1268 = vadd.f32 %v1267, %v1232
    %v1269 = vrot.slane %v1268, 4
    %v1270 = vadd.f32 %v1268, %v1269
    %v1271 = vrot.slane %v1270, 2
    %v1272 = vadd.f32 %v1270, %v1271
    %v1273 = vrot.slane %v1272, 1
    %v1274 = vadd.f32 %v1272, %v1273
    %v1275 = vmul.f32 %v1253, 0.0078125
    %v1276 = vmul.f32 %v1274, 0.0078125
    %v1277 = vmul.f32 %v1199, %v1199
    %v1278 = vmul.f32 %v1200, %v1200
    %v1279 = vsub.f32 %v1275, %v1277
    %v1280 = vsub.f32 %v1276, %v1278
    %v1281 = vmax.f32 %v1279, 0.0
    %v1282 = vmax.f32 %v1280, 0.0
    %v1283 = vadd.f32 %v1281, 1e-05
    %v1284 = vadd.f32 %v1282, 1e-05
    %v1285 = vrsqrt.pop %v1283
    %v1286 = vrsqrt.pop %v1284
    %v1289 = vcombine.low %v1285, %v1286
    %v1291 = vunpack.c.l.s4 1966171168
    %v1292 = vunpack.c.0.s8 %v1291
    %v1293 = vlaneseq
    %v1294 = vshrl.u32 %v1293, 7
    %v1295 = vsub.s32 %v1292, %v1294
    %v1296 = vrot.slane %v1289, %v1295
    %v1298 = vunpack.c.l.s4 1966171168
    %v1299 = vunpack.c.0.s8 %v1298
    %v1300 = vlaneseq
    %v1301 = vshrl.u32 %v1300, 7
    %v1302 = vsub.s32 %v1299, %v1301
    %v1303 = vrot.slane %v1296, %v1302
    %v1305 = vmul.f32 %v855, %v1303
    %v1307 = vlaneseq
    %v1308 = vshrl.u32 %v1307, 7
    %v1309 = vsub.s32 0, %v1308
    %v1310 = vrot.slane %v1305, %v1309
    %v1311 = vlaneseq
    %v1312 = vshrl.u32 %v1311, 7
    %v1313 = vsub.s32 1, %v1312
    %v1314 = vrot.slane %v1305, %v1313
    %v1317 = vmul.f32 %v1199, %v1310
    %v1318 = vmul.f32 %v1200, %v1314
    %v1321 = vcombine.low %v1317, %v1318
    %v1323 = vunpack.c.l.s4 1966171168
    %v1324 = vunpack.c.0.s8 %v1323
    %v1325 = vlaneseq
    %v1326 = vshrl.u32 %v1325, 7
    %v1327 = vsub.s32 %v1324, %v1326
    %v1328 = vrot.slane %v1321, %v1327
    %v1330 = vunpack.c.l.s4 1966171168
    %v1331 = vunpack.c.0.s8 %v1330
    %v1332 = vlaneseq
    %v1333 = vshrl.u32 %v1332, 7
    %v1334 = vsub.s32 %v1331, %v1333
    %v1335 = vrot.slane %v1328, %v1334
    %v1337 = vsub.f32 %v856, %v1335
    %v1338 = vmul.f32 %v1125, %v1310
    %v1339 = vmul.f32 %v1126, %v1314
    %v1340 = vmul.f32 %v1127, %v1310
    %v1341 = vmul.f32 %v1128, %v1314
    %v1342 = vmul.f32 %v1129, %v1310
    %v1343 = vmul.f32 %v1130, %v1314
    %v1344 = vmul.f32 %v1131, %v1310
    %v1345 = vmul.f32 %v1132, %v1314
    %v1346 = vmul.f32 %v1133, %v1310
    %v1347 = vmul.f32 %v1134, %v1314
    %v1348 = vmul.f32 %v1135, %v1310
    %v1349 = vmul.f32 %v1136, %v1314
    %v1350 = vmul.f32 %v1137, %v1310
    %v1351 = vmul.f32 %v1138, %v1314
    %v1352 = vmul.f32 %v1139, %v1310
    %v1353 = vmul.f32 %v1140, %v1314
    %v1354 = vmul.f32 %v1141, %v1310
    %v1355 = vmul.f32 %v1142, %v1314
    %v1356 = vmul.f32 %v1143, %v1310
    %v1357 = vmul.f32 %v1144, %v1314
    %v1358 = vmul.f32 %v1145, %v1310
    %v1359 = vmul.f32 %v1146, %v1314
    %v1360 = vmul.f32 %v1147, %v1310
    %v1361 = vmul.f32 %v1148, %v1314
    %v1362 = vmul.f32 %v1149, %v1310
    %v1363 = vmul.f32 %v1150, %v1314
    %v1364 = vmul.f32 %v1151, %v1310
    %v1365 = vmul.f32 %v1152, %v1314
    %v1366 = vmul.f32 %v1153, %v1310
    %v1367 = vmul.f32 %v1154, %v1314
    %v1368 = vmul.f32 %v1155, %v1310
    %v1369 = vmul.f32 %v1156, %v1314
    %v1371 = vlaneseq
    %v1372 = vshrl.u32 %v1371, 7
    %v1373 = vsub.s32 0, %v1372
    %v1374 = vrot.slane %v1337, %v1373
    %v1375 = vlaneseq
    %v1376 = vshrl.u32 %v1375, 7
    %v1377 = vsub.s32 1, %v1376
    %v1378 = vrot.slane %v1337, %v1377
    %v1381 = vadd.f32 %v1338, %v1374
    %v1382 = vadd.f32 %v1339, %v1378
    %v1383 = vadd.f32 %v1340, %v1374
    %v1384 = vadd.f32 %v1341, %v1378
    %v1385 = vadd.f32 %v1342, %v1374
    %v1386 = vadd.f32 %v1343, %v1378
    %v1387 = vadd.f32 %v1344, %v1374
    %v1388 = vadd.f32 %v1345, %v1378
    %v1389 = vadd.f32 %v1346, %v1374
    %v1390 = vadd.f32 %v1347, %v1378
    %v1391 = vadd.f32 %v1348, %v1374
    %v1392 = vadd.f32 %v1349, %v1378
    %v1393 = vadd.f32 %v1350, %v1374
    %v1394 = vadd.f32 %v1351, %v1378
    %v1395 = vadd.f32 %v1352, %v1374
    %v1396 = vadd.f32 %v1353, %v1378
    %v1397 = vadd.f32 %v1354, %v1374
    %v1398 = vadd.f32 %v1355, %v1378
    %v1399 = vadd.f32 %v1356, %v1374
    %v1400 = vadd.f32 %v1357, %v1378
    %v1401 = vadd.f32 %v1358, %v1374
    %v1402 = vadd.f32 %v1359, %v1378
    %v1403 = vadd.f32 %v1360, %v1374
    %v1404 = vadd.f32 %v1361, %v1378
    %v1405 = vadd.f32 %v1362, %v1374
    %v1406 = vadd.f32 %v1363, %v1378
    %v1407 = vadd.f32 %v1364, %v1374
    %v1408 = vadd.f32 %v1365, %v1378
    %v1409 = vadd.f32 %v1366, %v1374
    %v1410 = vadd.f32 %v1367, %v1378
    %v1411 = vadd.f32 %v1368, %v1374
    %v1412 = vadd.f32 %v1369, %v1378
    %v1413 = vpack.c.bf16 %v1383, %v1381
    %v1414 = vpack.c.bf16 %v1384, %v1382
    %v1415 = vpack.c.bf16 %v1387, %v1385
    %v1416 = vpack.c.bf16 %v1388, %v1386
    %v1417 = vpack.c.bf16 %v1391, %v1389
    %v1418 = vpack.c.bf16 %v1392, %v1390
    %v1419 = vpack.c.bf16 %v1395, %v1393
    %v1420 = vpack.c.bf16 %v1396, %v1394
    %v1421 = vpack.c.bf16 %v1399, %v1397
    %v1422 = vpack.c.bf16 %v1400, %v1398
    %v1423 = vpack.c.bf16 %v1403, %v1401
    %v1424 = vpack.c.bf16 %v1404, %v1402
    %v1425 = vpack.c.bf16 %v1407, %v1405
    %v1426 = vpack.c.bf16 %v1408, %v1406
    %v1427 = vpack.c.bf16 %v1411, %v1409
    %v1428 = vpack.c.bf16 %v1412, %v1410
    %s1429 = smul.u32 4, 32
    %s1430 = smul.u32 %s1429, 4
    %s1431 = sshll.u32 %s1430, 4
    %1432 = dma.done [#allocation4], %s1431
    %v1433 = vld [vmem:[#allocation2] sm:$0xff]
    %v1434 = vld [vmem:[#allocation2 + $0x8] sm:$0xff]
    %v1435 = vld [vmem:[#allocation2 + $0x10] sm:$0xff]
    %v1436 = vld [vmem:[#allocation2 + $0x18] sm:$0xff]
    %v1437 = vld [vmem:[#allocation2 + $0x20] sm:$0xff]
    %v1438 = vld [vmem:[#allocation2 + $0x28] sm:$0xff]
    %v1439 = vld [vmem:[#allocation2 + $0x30] sm:$0xff]
    %v1440 = vld [vmem:[#allocation2 + $0x38] sm:$0xff]
    %v1441 = vld [vmem:[#allocation2 + $0x40] sm:$0xff]
    %v1442 = vld [vmem:[#allocation2 + $0x48] sm:$0xff]
    %v1443 = vld [vmem:[#allocation2 + $0x50] sm:$0xff]
    %v1444 = vld [vmem:[#allocation2 + $0x58] sm:$0xff]
    %v1445 = vld [vmem:[#allocation2 + $0x60] sm:$0xff]
    %v1446 = vld [vmem:[#allocation2 + $0x68] sm:$0xff]
    %v1447 = vld [vmem:[#allocation2 + $0x70] sm:$0xff]
    %v1448 = vld [vmem:[#allocation2 + $0x78] sm:$0xff]
    %v1449 = vld [vmem:[#allocation2 + $0x80] sm:$0xff]
    %v1450 = vld [vmem:[#allocation2 + $0x88] sm:$0xff]
    %v1451 = vld [vmem:[#allocation2 + $0x90] sm:$0xff]
    %v1452 = vld [vmem:[#allocation2 + $0x98] sm:$0xff]
    %v1453 = vld [vmem:[#allocation2 + $0xa0] sm:$0xff]
    %v1454 = vld [vmem:[#allocation2 + $0xa8] sm:$0xff]
    %v1455 = vld [vmem:[#allocation2 + $0xb0] sm:$0xff]
    %v1456 = vld [vmem:[#allocation2 + $0xb8] sm:$0xff]
    %v1457 = vld [vmem:[#allocation2 + $0xc0] sm:$0xff]
    %v1458 = vld [vmem:[#allocation2 + $0xc8] sm:$0xff]
    %v1459 = vld [vmem:[#allocation2 + $0xd0] sm:$0xff]
    %v1460 = vld [vmem:[#allocation2 + $0xd8] sm:$0xff]
    %v1461 = vld [vmem:[#allocation2 + $0xe0] sm:$0xff]
    %v1462 = vld [vmem:[#allocation2 + $0xe8] sm:$0xff]
    %v1463 = vld [vmem:[#allocation2 + $0xf0] sm:$0xff]
    %v1464 = vld [vmem:[#allocation2 + $0xf8] sm:$0xff]
    %v1465 = vld [vmem:[#allocation2 + $0x100] sm:$0xff]
    %v1466 = vld [vmem:[#allocation2 + $0x108] sm:$0xff]
    %v1467 = vld [vmem:[#allocation2 + $0x110] sm:$0xff]
    %v1468 = vld [vmem:[#allocation2 + $0x118] sm:$0xff]
    %v1469 = vld [vmem:[#allocation2 + $0x120] sm:$0xff]
    %v1470 = vld [vmem:[#allocation2 + $0x128] sm:$0xff]
    %v1471 = vld [vmem:[#allocation2 + $0x130] sm:$0xff]
    %v1472 = vld [vmem:[#allocation2 + $0x138] sm:$0xff]
    %v1473 = vld [vmem:[#allocation2 + $0x140] sm:$0xff]
    %v1474 = vld [vmem:[#allocation2 + $0x148] sm:$0xff]
    %v1475 = vld [vmem:[#allocation2 + $0x150] sm:$0xff]
    %v1476 = vld [vmem:[#allocation2 + $0x158] sm:$0xff]
    %v1477 = vld [vmem:[#allocation2 + $0x160] sm:$0xff]
    %v1478 = vld [vmem:[#allocation2 + $0x168] sm:$0xff]
    %v1479 = vld [vmem:[#allocation2 + $0x170] sm:$0xff]
    %v1480 = vld [vmem:[#allocation2 + $0x178] sm:$0xff]
    %v1481 = vld [vmem:[#allocation2 + $0x180] sm:$0xff]
    %v1482 = vld [vmem:[#allocation2 + $0x188] sm:$0xff]
    %v1483 = vld [vmem:[#allocation2 + $0x190] sm:$0xff]
    %v1484 = vld [vmem:[#allocation2 + $0x198] sm:$0xff]
    %v1485 = vld [vmem:[#allocation2 + $0x1a0] sm:$0xff]
    %v1486 = vld [vmem:[#allocation2 + $0x1a8] sm:$0xff]
    %v1487 = vld [vmem:[#allocation2 + $0x1b0] sm:$0xff]
    %v1488 = vld [vmem:[#allocation2 + $0x1b8] sm:$0xff]
    %v1489 = vld [vmem:[#allocation2 + $0x1c0] sm:$0xff]
    %v1490 = vld [vmem:[#allocation2 + $0x1c8] sm:$0xff]
    %v1491 = vld [vmem:[#allocation2 + $0x1d0] sm:$0xff]
    %v1492 = vld [vmem:[#allocation2 + $0x1d8] sm:$0xff]
    %v1493 = vld [vmem:[#allocation2 + $0x1e0] sm:$0xff]
    %v1494 = vld [vmem:[#allocation2 + $0x1e8] sm:$0xff]
    %v1495 = vld [vmem:[#allocation2 + $0x1f0] sm:$0xff]
    %v1496 = vld [vmem:[#allocation2 + $0x1f8] sm:$0xff]
    %v1497 = vld [vmem:[%s11] sm:$0xf]
    %v1498 = vld [vmem:[#allocation15] sm:$0xf]
    %v1499 = vld [vmem:[#allocation16] sm:$0xf]
    %v1501 = vlaneseq
    %v1502 = vshrl.u32 %v1501, 7
    %v1503 = vsub.s32 0, %v1502
    %v1504 = vrot.slane %v1497, %v1503
    %v1505 = vlaneseq
    %v1506 = vshrl.u32 %v1505, 7
    %v1507 = vsub.s32 1, %v1506
    %v1508 = vrot.slane %v1497, %v1507
    %v1509 = vlaneseq
    %v1510 = vshrl.u32 %v1509, 7
    %v1511 = vsub.s32 2, %v1510
    %v1512 = vrot.slane %v1497, %v1511
    %v1513 = vlaneseq
    %v1514 = vshrl.u32 %v1513, 7
    %v1515 = vsub.s32 3, %v1514
    %v1516 = vrot.slane %v1497, %v1515
    %1521 = vmatprep.subr.bf16.mxu0 %v1434
    %1522 = vmatpush1.bf16.msra.mxu0 %v1433
    %1523 = vmatprep.subr.bf16.mxu0 %v1438
    %1524 = vmatpush1.bf16.msra.mxu0 %v1437
    %1525 = vmatprep.subr.bf16.mxu0 %v1442
    %1526 = vmatpush1.bf16.msra.mxu0 %v1441
    %1527 = vmatprep.subr.bf16.mxu0 %v1446
    %1528 = vmatpush1.bf16.msra.mxu0 %v1445
    %1529 = vmatprep.subr.bf16.mxu0 %v1450
    %1530 = vmatpush1.bf16.msra.mxu0 %v1449
    %1531 = vmatprep.subr.bf16.mxu0 %v1454
    %1532 = vmatpush1.bf16.msra.mxu0 %v1453
    %1533 = vmatprep.subr.bf16.mxu0 %v1458
    %1534 = vmatpush1.bf16.msra.mxu0 %v1457
    %1535 = vmatprep.subr.bf16.mxu0 %v1462
    %1536 = vmatpush1.bf16.msra.mxu0 %v1461
    %1537 = vmatprep.subr.bf16.mxu0 %v1466
    %1538 = vmatpush1.bf16.msra.mxu0 %v1465
    %1539 = vmatprep.subr.bf16.mxu0 %v1470
    %1540 = vmatpush1.bf16.msra.mxu0 %v1469
    %1541 = vmatprep.subr.bf16.mxu0 %v1474
    %1542 = vmatpush1.bf16.msra.mxu0 %v1473
    %1543 = vmatprep.subr.bf16.mxu0 %v1478
    %1544 = vmatpush1.bf16.msra.mxu0 %v1477
    %1545 = vmatprep.subr.bf16.mxu0 %v1482
    %1546 = vmatpush1.bf16.msra.mxu0 %v1481
    %1547 = vmatprep.subr.bf16.mxu0 %v1486
    %1548 = vmatpush1.bf16.msra.mxu0 %v1485
    %1549 = vmatprep.subr.bf16.mxu0 %v1490
    %1550 = vmatpush1.bf16.msra.mxu0 %v1489
    %1551 = vmatprep.subr.bf16.mxu0 %v1494
    %1552 = vmatpush1.bf16.msra.mxu0 %v1493
    %1553 = vmatprep.mubr.bf16.mxu0 %v1414
    %1554 = vmatmul.mubr.bf16.gmra.mrb[0].mxu0 %v1413
    %v1555 = vpop.f32.mrb[0].mxu0
    %v1556 = vadd.f32 %v1504, %v1555
    %v1557 = vpop.f32.mrb[0].mxu0
    %v1558 = vadd.f32 %v1508, %v1557
    %v1559 = vpop.f32.mrb[0].mxu0
    %v1560 = vadd.f32 %v1504, %v1559
    %v1561 = vpop.f32.mrb[0].mxu0
    %v1562 = vadd.f32 %v1508, %v1561
    %1563 = vmatprep.mubr.bf16.mxu0 %v1416
    %1564 = vmatmul.mubr.bf16.gmra.mrb[0].mxu0 %v1415
    %v1565 = vpop.f32.mrb[0].mxu0
    %v1566 = vadd.f32 %v1504, %v1565
    %v1567 = vpop.f32.mrb[0].mxu0
    %v1568 = vadd.f32 %v1508, %v1567
    %v1569 = vpop.f32.mrb[0].mxu0
    %v1570 = vadd.f32 %v1504, %v1569
    %v1571 = vpop.f32.mrb[0].mxu0
    %v1572 = vadd.f32 %v1508, %v1571
    %1573 = vmatprep.mubr.bf16.mxu0 %v1418
    %1574 = vmatmul.mubr.bf16.gmra.mrb[0].mxu0 %v1417
    %v1575 = vpop.f32.mrb[0].mxu0
    %v1576 = vadd.f32 %v1504, %v1575
    %v1577 = vpop.f32.mrb[0].mxu0
    %v1578 = vadd.f32 %v1508, %v1577
    %v1579 = vpop.f32.mrb[0].mxu0
    %v1580 = vadd.f32 %v1504, %v1579
    %v1581 = vpop.f32.mrb[0].mxu0
    %v1582 = vadd.f32 %v1508, %v1581
    %1583 = vmatprep.mubr.bf16.mxu0 %v1420
    %1584 = vmatmul.mubr.bf16.gmra.mrb[0].mxu0 %v1419
    %v1585 = vpop.f32.mrb[0].mxu0
    %v1586 = vadd.f32 %v1504, %v1585
    %v1587 = vpop.f32.mrb[0].mxu0
    %v1588 = vadd.f32 %v1508, %v1587
    %v1589 = vpop.f32.mrb[0].mxu0
    %v1590 = vadd.f32 %v1504, %v1589
    %v1591 = vpop.f32.mrb[0].mxu0
    %v1592 = vadd.f32 %v1508, %v1591
    %1593 = vmatprep.mubr.bf16.mxu0 %v1422
    %1594 = vmatmul.mubr.bf16.gmra.mrb[0].mxu0 %v1421
    %v1595 = vpop.f32.mrb[0].mxu0
    %v1596 = vadd.f32 %v1504, %v1595
    %v1597 = vpop.f32.mrb[0].mxu0
    %v1598 = vadd.f32 %v1508, %v1597
    %v1599 = vpop.f32.mrb[0].mxu0
    %v1600 = vadd.f32 %v1504, %v1599
    %v1601 = vpop.f32.mrb[0].mxu0
    %v1602 = vadd.f32 %v1508, %v1601
    %1603 = vmatprep.mubr.bf16.mxu0 %v1424
    %1604 = vmatmul.mubr.bf16.gmra.mrb[0].mxu0 %v1423
    %v1605 = vpop.f32.mrb[0].mxu0
    %v1606 = vadd.f32 %v1504, %v1605
    %v1607 = vpop.f32.mrb[0].mxu0
    %v1608 = vadd.f32 %v1508, %v1607
    %v1609 = vpop.f32.mrb[0].mxu0
    %v1610 = vadd.f32 %v1504, %v1609
    %v1611 = vpop.f32.mrb[0].mxu0
    %v1612 = vadd.f32 %v1508, %v1611
    %1613 = vmatprep.mubr.bf16.mxu0 %v1426
    %1614 = vmatmul.mubr.bf16.gmra.mrb[0].mxu0 %v1425
    %v1615 = vpop.f32.mrb[0].mxu0
    %v1616 = vadd.f32 %v1504, %v1615
    %v1617 = vpop.f32.mrb[0].mxu0
    %v1618 = vadd.f32 %v1508, %v1617
    %v1619 = vpop.f32.mrb[0].mxu0
    %v1620 = vadd.f32 %v1504, %v1619
    %v1621 = vpop.f32.mrb[0].mxu0
    %v1622 = vadd.f32 %v1508, %v1621
    %1623 = vmatprep.mubr.bf16.mxu0 %v1428
    %1624 = vmatmul.mubr.bf16.gmra.mrb[0].mxu0 %v1427
    %v1625 = vpop.f32.mrb[0].mxu0
    %v1626 = vadd.f32 %v1504, %v1625
    %v1627 = vpop.f32.mrb[0].mxu0
    %v1628 = vadd.f32 %v1508, %v1627
    %v1629 = vpop.f32.mrb[0].mxu0
    %v1630 = vadd.f32 %v1504, %v1629
    %v1631 = vpop.f32.mrb[0].mxu0
    %v1632 = vadd.f32 %v1508, %v1631
    %1633 = vdwg.mxu0
    %1634 = vmatprep.subr.bf16.mxu0 %v1436
    %1635 = vmatpush1.bf16.msra.mxu0 %v1435
    %1636 = vmatprep.subr.bf16.mxu0 %v1440
    %1637 = vmatpush1.bf16.msra.mxu0 %v1439
    %1638 = vmatprep.subr.bf16.mxu0 %v1444
    %1639 = vmatpush1.bf16.msra.mxu0 %v1443
    %1640 = vmatprep.subr.bf16.mxu0 %v1448
    %1641 = vmatpush1.bf16.msra.mxu0 %v1447
    %1642 = vmatprep.subr.bf16.mxu0 %v1452
    %1643 = vmatpush1.bf16.msra.mxu0 %v1451
    %1644 = vmatprep.subr.bf16.mxu0 %v1456
    %1645 = vmatpush1.bf16.msra.mxu0 %v1455
    %1646 = vmatprep.subr.bf16.mxu0 %v1460
    %1647 = vmatpush1.bf16.msra.mxu0 %v1459
    %1648 = vmatprep.subr.bf16.mxu0 %v1464
    %1649 = vmatpush1.bf16.msra.mxu0 %v1463
    %1650 = vmatprep.subr.bf16.mxu0 %v1468
    %1651 = vmatpush1.bf16.msra.mxu0 %v1467
    %1652 = vmatprep.subr.bf16.mxu0 %v1472
    %1653 = vmatpush1.bf16.msra.mxu0 %v1471
    %1654 = vmatprep.subr.bf16.mxu0 %v1476
    %1655 = vmatpush1.bf16.msra.mxu0 %v1475
    %1656 = vmatprep.subr.bf16.mxu0 %v1480
    %1657 = vmatpush1.bf16.msra.mxu0 %v1479
    %1658 = vmatprep.subr.bf16.mxu0 %v1484
    %1659 = vmatpush1.bf16.msra.mxu0 %v1483
    %1660 = vmatprep.subr.bf16.mxu0 %v1488
    %1661 = vmatpush1.bf16.msra.mxu0 %v1487
    %1662 = vmatprep.subr.bf16.mxu0 %v1492
    %1663 = vmatpush1.bf16.msra.mxu0 %v1491
    %1664 = vmatprep.subr.bf16.mxu0 %v1496
    %1665 = vmatpush1.bf16.msra.mxu0 %v1495
    %1666 = vmatprep.mubr.bf16.mxu0 %v1414
    %1667 = vmatmul.mubr.bf16.gmra.mrb[0].mxu0 %v1413
    %v1668 = vpop.f32.mrb[0].mxu0
    %v1669 = vadd.f32 %v1512, %v1668
    %v1670 = vpop.f32.mrb[0].mxu0
    %v1671 = vadd.f32 %v1516, %v1670
    %v1672 = vpop.f32.mrb[0].mxu0
    %v1673 = vadd.f32 %v1512, %v1672
    %v1674 = vpop.f32.mrb[0].mxu0
    %v1675 = vadd.f32 %v1516, %v1674
    %1676 = vmatprep.mubr.bf16.mxu0 %v1416
    %1677 = vmatmul.mubr.bf16.gmra.mrb[0].mxu0 %v1415
    %v1678 = vpop.f32.mrb[0].mxu0
    %v1679 = vadd.f32 %v1512, %v1678
    %v1680 = vpop.f32.mrb[0].mxu0
    %v1681 = vadd.f32 %v1516, %v1680
    %v1682 = vpop.f32.mrb[0].mxu0
    %v1683 = vadd.f32 %v1512, %v1682
    %v1684 = vpop.f32.mrb[0].mxu0
    %v1685 = vadd.f32 %v1516, %v1684
    %1686 = vmatprep.mubr.bf16.mxu0 %v1418
    %1687 = vmatmul.mubr.bf16.gmra.mrb[0].mxu0 %v1417
    %v1688 = vpop.f32.mrb[0].mxu0
    %v1689 = vadd.f32 %v1512, %v1688
    %v1690 = vpop.f32.mrb[0].mxu0
    %v1691 = vadd.f32 %v1516, %v1690
    %v1692 = vpop.f32.mrb[0].mxu0
    %v1693 = vadd.f32 %v1512, %v1692
    %v1694 = vpop.f32.mrb[0].mxu0
    %v1695 = vadd.f32 %v1516, %v1694
    %1696 = vmatprep.mubr.bf16.mxu0 %v1420
    %1697 = vmatmul.mubr.bf16.gmra.mrb[0].mxu0 %v1419
    %v1698 = vpop.f32.mrb[0].mxu0
    %v1699 = vadd.f32 %v1512, %v1698
    %v1700 = vpop.f32.mrb[0].mxu0
    %v1701 = vadd.f32 %v1516, %v1700
    %v1702 = vpop.f32.mrb[0].mxu0
    %v1703 = vadd.f32 %v1512, %v1702
    %v1704 = vpop.f32.mrb[0].mxu0
    %v1705 = vadd.f32 %v1516, %v1704
    %1706 = vmatprep.mubr.bf16.mxu0 %v1422
    %1707 = vmatmul.mubr.bf16.gmra.mrb[0].mxu0 %v1421
    %v1708 = vpop.f32.mrb[0].mxu0
    %v1709 = vadd.f32 %v1512, %v1708
    %v1710 = vpop.f32.mrb[0].mxu0
    %v1711 = vadd.f32 %v1516, %v1710
    %v1712 = vpop.f32.mrb[0].mxu0
    %v1713 = vadd.f32 %v1512, %v1712
    %v1714 = vpop.f32.mrb[0].mxu0
    %v1715 = vadd.f32 %v1516, %v1714
    %1716 = vmatprep.mubr.bf16.mxu0 %v1424
    %1717 = vmatmul.mubr.bf16.gmra.mrb[0].mxu0 %v1423
    %v1718 = vpop.f32.mrb[0].mxu0
    %v1719 = vadd.f32 %v1512, %v1718
    %v1720 = vpop.f32.mrb[0].mxu0
    %v1721 = vadd.f32 %v1516, %v1720
    %v1722 = vpop.f32.mrb[0].mxu0
    %v1723 = vadd.f32 %v1512, %v1722
    %v1724 = vpop.f32.mrb[0].mxu0
    %v1725 = vadd.f32 %v1516, %v1724
    %1726 = vmatprep.mubr.bf16.mxu0 %v1426
    %1727 = vmatmul.mubr.bf16.gmra.mrb[0].mxu0 %v1425
    %v1728 = vpop.f32.mrb[0].mxu0
    %v1729 = vadd.f32 %v1512, %v1728
    %v1730 = vpop.f32.mrb[0].mxu0
    %v1731 = vadd.f32 %v1516, %v1730
    %v1732 = vpop.f32.mrb[0].mxu0
    %v1733 = vadd.f32 %v1512, %v1732
    %v1734 = vpop.f32.mrb[0].mxu0
    %v1735 = vadd.f32 %v1516, %v1734
    %1736 = vmatprep.mubr.bf16.mxu0 %v1428
    %1737 = vmatmul.mubr.bf16.gmra.mrb[0].mxu0 %v1427
    %v1738 = vpop.f32.mrb[0].mxu0
    %v1739 = vadd.f32 %v1512, %v1738
    %v1740 = vpop.f32.mrb[0].mxu0
    %v1741 = vadd.f32 %v1516, %v1740
    %v1742 = vpop.f32.mrb[0].mxu0
    %v1743 = vadd.f32 %v1512, %v1742
    %v1744 = vpop.f32.mrb[0].mxu0
    %v1745 = vadd.f32 %v1516, %v1744
    %1746 = vdwg.mxu0
    %vm1747 = vcmp.gt.f32.partialorder %v1556, 0.0
    %vm1748 = vcmp.gt.f32.partialorder %v1558, 0.0
    %vm1749 = vcmp.gt.f32.partialorder %v1669, 0.0
    %vm1750 = vcmp.gt.f32.partialorder %v1671, 0.0
    %vm1751 = vcmp.gt.f32.partialorder %v1560, 0.0
    %vm1752 = vcmp.gt.f32.partialorder %v1562, 0.0
    %vm1753 = vcmp.gt.f32.partialorder %v1673, 0.0
    %vm1754 = vcmp.gt.f32.partialorder %v1675, 0.0
    %vm1755 = vcmp.gt.f32.partialorder %v1566, 0.0
    %vm1756 = vcmp.gt.f32.partialorder %v1568, 0.0
    %vm1757 = vcmp.gt.f32.partialorder %v1679, 0.0
    %vm1758 = vcmp.gt.f32.partialorder %v1681, 0.0
    %vm1759 = vcmp.gt.f32.partialorder %v1570, 0.0
    %vm1760 = vcmp.gt.f32.partialorder %v1572, 0.0
    %vm1761 = vcmp.gt.f32.partialorder %v1683, 0.0
    %vm1762 = vcmp.gt.f32.partialorder %v1685, 0.0
    %vm1763 = vcmp.gt.f32.partialorder %v1576, 0.0
    %vm1764 = vcmp.gt.f32.partialorder %v1578, 0.0
    %vm1765 = vcmp.gt.f32.partialorder %v1689, 0.0
    %vm1766 = vcmp.gt.f32.partialorder %v1691, 0.0
    %vm1767 = vcmp.gt.f32.partialorder %v1580, 0.0
    %vm1768 = vcmp.gt.f32.partialorder %v1582, 0.0
    %vm1769 = vcmp.gt.f32.partialorder %v1693, 0.0
    %vm1770 = vcmp.gt.f32.partialorder %v1695, 0.0
    %vm1771 = vcmp.gt.f32.partialorder %v1586, 0.0
    %vm1772 = vcmp.gt.f32.partialorder %v1588, 0.0
    %vm1773 = vcmp.gt.f32.partialorder %v1699, 0.0
    %vm1774 = vcmp.gt.f32.partialorder %v1701, 0.0
    %vm1775 = vcmp.gt.f32.partialorder %v1590, 0.0
    %vm1776 = vcmp.gt.f32.partialorder %v1592, 0.0
    %vm1777 = vcmp.gt.f32.partialorder %v1703, 0.0
    %vm1778 = vcmp.gt.f32.partialorder %v1705, 0.0
    %vm1779 = vcmp.gt.f32.partialorder %v1596, 0.0
    %vm1780 = vcmp.gt.f32.partialorder %v1598, 0.0
    %vm1781 = vcmp.gt.f32.partialorder %v1709, 0.0
    %vm1782 = vcmp.gt.f32.partialorder %v1711, 0.0
    %vm1783 = vcmp.gt.f32.partialorder %v1600, 0.0
    %vm1784 = vcmp.gt.f32.partialorder %v1602, 0.0
    %vm1785 = vcmp.gt.f32.partialorder %v1713, 0.0
    %vm1786 = vcmp.gt.f32.partialorder %v1715, 0.0
    %vm1787 = vcmp.gt.f32.partialorder %v1606, 0.0
    %vm1788 = vcmp.gt.f32.partialorder %v1608, 0.0
    %vm1789 = vcmp.gt.f32.partialorder %v1719, 0.0
    %vm1790 = vcmp.gt.f32.partialorder %v1721, 0.0
    %vm1791 = vcmp.gt.f32.partialorder %v1610, 0.0
    %vm1792 = vcmp.gt.f32.partialorder %v1612, 0.0
    %vm1793 = vcmp.gt.f32.partialorder %v1723, 0.0
    %vm1794 = vcmp.gt.f32.partialorder %v1725, 0.0
    %vm1795 = vcmp.gt.f32.partialorder %v1616, 0.0
    %vm1796 = vcmp.gt.f32.partialorder %v1618, 0.0
    %vm1797 = vcmp.gt.f32.partialorder %v1729, 0.0
    %vm1798 = vcmp.gt.f32.partialorder %v1731, 0.0
    %vm1799 = vcmp.gt.f32.partialorder %v1620, 0.0
    %vm1800 = vcmp.gt.f32.partialorder %v1622, 0.0
    %vm1801 = vcmp.gt.f32.partialorder %v1733, 0.0
    %vm1802 = vcmp.gt.f32.partialorder %v1735, 0.0
    %vm1803 = vcmp.gt.f32.partialorder %v1626, 0.0
    %vm1804 = vcmp.gt.f32.partialorder %v1628, 0.0
    %vm1805 = vcmp.gt.f32.partialorder %v1739, 0.0
    %vm1806 = vcmp.gt.f32.partialorder %v1741, 0.0
    %vm1807 = vcmp.gt.f32.partialorder %v1630, 0.0
    %vm1808 = vcmp.gt.f32.partialorder %v1632, 0.0
    %vm1809 = vcmp.gt.f32.partialorder %v1743, 0.0
    %vm1810 = vcmp.gt.f32.partialorder %v1745, 0.0
    %v1811 = vmul.f32 %v1556, 0.2
    %v1812 = vmul.f32 %v1558, 0.2
    %v1813 = vmul.f32 %v1669, 0.2
    %v1814 = vmul.f32 %v1671, 0.2
    %v1815 = vmul.f32 %v1560, 0.2
    %v1816 = vmul.f32 %v1562, 0.2
    %v1817 = vmul.f32 %v1673, 0.2
    %v1818 = vmul.f32 %v1675, 0.2
    %v1819 = vmul.f32 %v1566, 0.2
    %v1820 = vmul.f32 %v1568, 0.2
    %v1821 = vmul.f32 %v1679, 0.2
    %v1822 = vmul.f32 %v1681, 0.2
    %v1823 = vmul.f32 %v1570, 0.2
    %v1824 = vmul.f32 %v1572, 0.2
    %v1825 = vmul.f32 %v1683, 0.2
    %v1826 = vmul.f32 %v1685, 0.2
    %v1827 = vmul.f32 %v1576, 0.2
    %v1828 = vmul.f32 %v1578, 0.2
    %v1829 = vmul.f32 %v1689, 0.2
    %v1830 = vmul.f32 %v1691, 0.2
    %v1831 = vmul.f32 %v1580, 0.2
    %v1832 = vmul.f32 %v1582, 0.2
    %v1833 = vmul.f32 %v1693, 0.2
    %v1834 = vmul.f32 %v1695, 0.2
    %v1835 = vmul.f32 %v1586, 0.2
    %v1836 = vmul.f32 %v1588, 0.2
    %v1837 = vmul.f32 %v1699, 0.2
    %v1838 = vmul.f32 %v1701, 0.2
    %v1839 = vmul.f32 %v1590, 0.2
    %v1840 = vmul.f32 %v1592, 0.2
    %v1841 = vmul.f32 %v1703, 0.2
    %v1842 = vmul.f32 %v1705, 0.2
    %v1843 = vmul.f32 %v1596, 0.2
    %v1844 = vmul.f32 %v1598, 0.2
    %v1845 = vmul.f32 %v1709, 0.2
    %v1846 = vmul.f32 %v1711, 0.2
    %v1847 = vmul.f32 %v1600, 0.2
    %v1848 = vmul.f32 %v1602, 0.2
    %v1849 = vmul.f32 %v1713, 0.2
    %v1850 = vmul.f32 %v1715, 0.2
    %v1851 = vmul.f32 %v1606, 0.2
    %v1852 = vmul.f32 %v1608, 0.2
    %v1853 = vmul.f32 %v1719, 0.2
    %v1854 = vmul.f32 %v1721, 0.2
    %v1855 = vmul.f32 %v1610, 0.2
    %v1856 = vmul.f32 %v1612, 0.2
    %v1857 = vmul.f32 %v1723, 0.2
    %v1858 = vmul.f32 %v1725, 0.2
    %v1859 = vmul.f32 %v1616, 0.2
    %v1860 = vmul.f32 %v1618, 0.2
    %v1861 = vmul.f32 %v1729, 0.2
    %v1862 = vmul.f32 %v1731, 0.2
    %v1863 = vmul.f32 %v1620, 0.2
    %v1864 = vmul.f32 %v1622, 0.2
    %v1865 = vmul.f32 %v1733, 0.2
    %v1866 = vmul.f32 %v1735, 0.2
    %v1867 = vmul.f32 %v1626, 0.2
    %v1868 = vmul.f32 %v1628, 0.2
    %v1869 = vmul.f32 %v1739, 0.2
    %v1870 = vmul.f32 %v1741, 0.2
    %v1871 = vmul.f32 %v1630, 0.2
    %v1872 = vmul.f32 %v1632, 0.2
    %v1873 = vmul.f32 %v1743, 0.2
    %v1874 = vmul.f32 %v1745, 0.2
    %v1875 = vsel %vm1747, %v1556, %v1811
    %v1876 = vsel %vm1748, %v1558, %v1812
    %v1877 = vsel %vm1749, %v1669, %v1813
    %v1878 = vsel %vm1750, %v1671, %v1814
    %v1879 = vsel %vm1751, %v1560, %v1815
    %v1880 = vsel %vm1752, %v1562, %v1816
    %v1881 = vsel %vm1753, %v1673, %v1817
    %v1882 = vsel %vm1754, %v1675, %v1818
    %v1883 = vsel %vm1755, %v1566, %v1819
    %v1884 = vsel %vm1756, %v1568, %v1820
    %v1885 = vsel %vm1757, %v1679, %v1821
    %v1886 = vsel %vm1758, %v1681, %v1822
    %v1887 = vsel %vm1759, %v1570, %v1823
    %v1888 = vsel %vm1760, %v1572, %v1824
    %v1889 = vsel %vm1761, %v1683, %v1825
    %v1890 = vsel %vm1762, %v1685, %v1826
    %v1891 = vsel %vm1763, %v1576, %v1827
    %v1892 = vsel %vm1764, %v1578, %v1828
    %v1893 = vsel %vm1765, %v1689, %v1829
    %v1894 = vsel %vm1766, %v1691, %v1830
    %v1895 = vsel %vm1767, %v1580, %v1831
    %v1896 = vsel %vm1768, %v1582, %v1832
    %v1897 = vsel %vm1769, %v1693, %v1833
    %v1898 = vsel %vm1770, %v1695, %v1834
    %v1899 = vsel %vm1771, %v1586, %v1835
    %v1900 = vsel %vm1772, %v1588, %v1836
    %v1901 = vsel %vm1773, %v1699, %v1837
    %v1902 = vsel %vm1774, %v1701, %v1838
    %v1903 = vsel %vm1775, %v1590, %v1839
    %v1904 = vsel %vm1776, %v1592, %v1840
    %v1905 = vsel %vm1777, %v1703, %v1841
    %v1906 = vsel %vm1778, %v1705, %v1842
    %v1907 = vsel %vm1779, %v1596, %v1843
    %v1908 = vsel %vm1780, %v1598, %v1844
    %v1909 = vsel %vm1781, %v1709, %v1845
    %v1910 = vsel %vm1782, %v1711, %v1846
    %v1911 = vsel %vm1783, %v1600, %v1847
    %v1912 = vsel %vm1784, %v1602, %v1848
    %v1913 = vsel %vm1785, %v1713, %v1849
    %v1914 = vsel %vm1786, %v1715, %v1850
    %v1915 = vsel %vm1787, %v1606, %v1851
    %v1916 = vsel %vm1788, %v1608, %v1852
    %v1917 = vsel %vm1789, %v1719, %v1853
    %v1918 = vsel %vm1790, %v1721, %v1854
    %v1919 = vsel %vm1791, %v1610, %v1855
    %v1920 = vsel %vm1792, %v1612, %v1856
    %v1921 = vsel %vm1793, %v1723, %v1857
    %v1922 = vsel %vm1794, %v1725, %v1858
    %v1923 = vsel %vm1795, %v1616, %v1859
    %v1924 = vsel %vm1796, %v1618, %v1860
    %v1925 = vsel %vm1797, %v1729, %v1861
    %v1926 = vsel %vm1798, %v1731, %v1862
    %v1927 = vsel %vm1799, %v1620, %v1863
    %v1928 = vsel %vm1800, %v1622, %v1864
    %v1929 = vsel %vm1801, %v1733, %v1865
    %v1930 = vsel %vm1802, %v1735, %v1866
    %v1931 = vsel %vm1803, %v1626, %v1867
    %v1932 = vsel %vm1804, %v1628, %v1868
    %v1933 = vsel %vm1805, %v1739, %v1869
    %v1934 = vsel %vm1806, %v1741, %v1870
    %v1935 = vsel %vm1807, %v1630, %v1871
    %v1936 = vsel %vm1808, %v1632, %v1872
    %v1937 = vsel %vm1809, %v1743, %v1873
    %v1938 = vsel %vm1810, %v1745, %v1874
    %v1939 = vadd.f32 %v1875, %v1879
    %v1940 = vadd.f32 %v1939, %v1883
    %v1941 = vadd.f32 %v1940, %v1887
    %v1942 = vadd.f32 %v1941, %v1891
    %v1943 = vadd.f32 %v1942, %v1895
    %v1944 = vadd.f32 %v1943, %v1899
    %v1945 = vadd.f32 %v1944, %v1903
    %v1946 = vadd.f32 %v1945, %v1907
    %v1947 = vadd.f32 %v1946, %v1911
    %v1948 = vadd.f32 %v1947, %v1915
    %v1949 = vadd.f32 %v1948, %v1919
    %v1950 = vadd.f32 %v1949, %v1923
    %v1951 = vadd.f32 %v1950, %v1927
    %v1952 = vadd.f32 %v1951, %v1931
    %v1953 = vadd.f32 %v1952, %v1935
    %v1954 = vrot.slane %v1953, 4
    %v1955 = vadd.f32 %v1953, %v1954
    %v1956 = vrot.slane %v1955, 2
    %v1957 = vadd.f32 %v1955, %v1956
    %v1958 = vrot.slane %v1957, 1
    %v1959 = vadd.f32 %v1957, %v1958
    %v1960 = vadd.f32 %v1876, %v1880
    %v1961 = vadd.f32 %v1960, %v1884
    %v1962 = vadd.f32 %v1961, %v1888
    %v1963 = vadd.f32 %v1962, %v1892
    %v1964 = vadd.f32 %v1963, %v1896
    %v1965 = vadd.f32 %v1964, %v1900
    %v1966 = vadd.f32 %v1965, %v1904
    %v1967 = vadd.f32 %v1966, %v1908
    %v1968 = vadd.f32 %v1967, %v1912
    %v1969 = vadd.f32 %v1968, %v1916
    %v1970 = vadd.f32 %v1969, %v1920
    %v1971 = vadd.f32 %v1970, %v1924
    %v1972 = vadd.f32 %v1971, %v1928
    %v1973 = vadd.f32 %v1972, %v1932
    %v1974 = vadd.f32 %v1973, %v1936
    %v1975 = vrot.slane %v1974, 4
    %v1976 = vadd.f32 %v1974, %v1975
    %v1977 = vrot.slane %v1976, 2
    %v1978 = vadd.f32 %v1976, %v1977
    %v1979 = vrot.slane %v1978, 1
    %v1980 = vadd.f32 %v1978, %v1979
    %v1981 = vadd.f32 %v1877, %v1881
    %v1982 = vadd.f32 %v1981, %v1885
    %v1983 = vadd.f32 %v1982, %v1889
    %v1984 = vadd.f32 %v1983, %v1893
    %v1985 = vadd.f32 %v1984, %v1897
    %v1986 = vadd.f32 %v1985, %v1901
    %v1987 = vadd.f32 %v1986, %v1905
    %v1988 = vadd.f32 %v1987, %v1909
    %v1989 = vadd.f32 %v1988, %v1913
    %v1990 = vadd.f32 %v1989, %v1917
    %v1991 = vadd.f32 %v1990, %v1921
    %v1992 = vadd.f32 %v1991, %v1925
    %v1993 = vadd.f32 %v1992, %v1929
    %v1994 = vadd.f32 %v1993, %v1933
    %v1995 = vadd.f32 %v1994, %v1937
    %v1996 = vrot.slane %v1995, 4
    %v1997 = vadd.f32 %v1995, %v1996
    %v1998 = vrot.slane %v1997, 2
    %v1999 = vadd.f32 %v1997, %v1998
    %v2000 = vrot.slane %v1999, 1
    %v2001 = vadd.f32 %v1999, %v2000
    %v2002 = vadd.f32 %v1878, %v1882
    %v2003 = vadd.f32 %v2002, %v1886
    %v2004 = vadd.f32 %v2003, %v1890
    %v2005 = vadd.f32 %v2004, %v1894
    %v2006 = vadd.f32 %v2005, %v1898
    %v2007 = vadd.f32 %v2006, %v1902
    %v2008 = vadd.f32 %v2007, %v1906
    %v2009 = vadd.f32 %v2008, %v1910
    %v2010 = vadd.f32 %v2009, %v1914
    %v2011 = vadd.f32 %v2010, %v1918
    %v2012 = vadd.f32 %v2011, %v1922
    %v2013 = vadd.f32 %v2012, %v1926
    %v2014 = vadd.f32 %v2013, %v1930
    %v2015 = vadd.f32 %v2014, %v1934
    %v2016 = vadd.f32 %v2015, %v1938
    %v2017 = vrot.slane %v2016, 4
    %v2018 = vadd.f32 %v2016, %v2017
    %v2019 = vrot.slane %v2018, 2
    %v2020 = vadd.f32 %v2018, %v2019
    %v2021 = vrot.slane %v2020, 1
    %v2022 = vadd.f32 %v2020, %v2021
    %v2023 = vmul.f32 %v1959, 0.0078125
    %v2024 = vmul.f32 %v1980, 0.0078125
    %v2025 = vmul.f32 %v2001, 0.0078125
    %v2026 = vmul.f32 %v2022, 0.0078125
    %v2027 = vmul.f32 %v1875, %v1875
    %v2028 = vmul.f32 %v1876, %v1876
    %v2029 = vmul.f32 %v1877, %v1877
    %v2030 = vmul.f32 %v1878, %v1878
    %v2031 = vmul.f32 %v1879, %v1879
    %v2032 = vmul.f32 %v1880, %v1880
    %v2033 = vmul.f32 %v1881, %v1881
    %v2034 = vmul.f32 %v1882, %v1882
    %v2035 = vmul.f32 %v1883, %v1883
    %v2036 = vmul.f32 %v1884, %v1884
    %v2037 = vmul.f32 %v1885, %v1885
    %v2038 = vmul.f32 %v1886, %v1886
    %v2039 = vmul.f32 %v1887, %v1887
    %v2040 = vmul.f32 %v1888, %v1888
    %v2041 = vmul.f32 %v1889, %v1889
    %v2042 = vmul.f32 %v1890, %v1890
    %v2043 = vmul.f32 %v1891, %v1891
    %v2044 = vmul.f32 %v1892, %v1892
    %v2045 = vmul.f32 %v1893, %v1893
    %v2046 = vmul.f32 %v1894, %v1894
    %v2047 = vmul.f32 %v1895, %v1895
    %v2048 = vmul.f32 %v1896, %v1896
    %v2049 = vmul.f32 %v1897, %v1897
    %v2050 = vmul.f32 %v1898, %v1898
    %v2051 = vmul.f32 %v1899, %v1899
    %v2052 = vmul.f32 %v1900, %v1900
    %v2053 = vmul.f32 %v1901, %v1901
    %v2054 = vmul.f32 %v1902, %v1902
    %v2055 = vmul.f32 %v1903, %v1903
    %v2056 = vmul.f32 %v1904, %v1904
    %v2057 = vmul.f32 %v1905, %v1905
    %v2058 = vmul.f32 %v1906, %v1906
    %v2059 = vmul.f32 %v1907, %v1907
    %v2060 = vmul.f32 %v1908, %v1908
    %v2061 = vmul.f32 %v1909, %v1909
    %v2062 = vmul.f32 %v1910, %v1910
    %v2063 = vmul.f32 %v1911, %v1911
    %v2064 = vmul.f32 %v1912, %v1912
    %v2065 = vmul.f32 %v1913, %v1913
    %v2066 = vmul.f32 %v1914, %v1914
    %v2067 = vmul.f32 %v1915, %v1915
    %v2068 = vmul.f32 %v1916, %v1916
    %v2069 = vmul.f32 %v1917, %v1917
    %v2070 = vmul.f32 %v1918, %v1918
    %v2071 = vmul.f32 %v1919, %v1919
    %v2072 = vmul.f32 %v1920, %v1920
    %v2073 = vmul.f32 %v1921, %v1921
    %v2074 = vmul.f32 %v1922, %v1922
    %v2075 = vmul.f32 %v1923, %v1923
    %v2076 = vmul.f32 %v1924, %v1924
    %v2077 = vmul.f32 %v1925, %v1925
    %v2078 = vmul.f32 %v1926, %v1926
    %v2079 = vmul.f32 %v1927, %v1927
    %v2080 = vmul.f32 %v1928, %v1928
    %v2081 = vmul.f32 %v1929, %v1929
    %v2082 = vmul.f32 %v1930, %v1930
    %v2083 = vmul.f32 %v1931, %v1931
    %v2084 = vmul.f32 %v1932, %v1932
    %v2085 = vmul.f32 %v1933, %v1933
    %v2086 = vmul.f32 %v1934, %v1934
    %v2087 = vmul.f32 %v1935, %v1935
    %v2088 = vmul.f32 %v1936, %v1936
    %v2089 = vmul.f32 %v1937, %v1937
    %v2090 = vmul.f32 %v1938, %v1938
    %v2091 = vadd.f32 %v2027, %v2031
    %v2092 = vadd.f32 %v2091, %v2035
    %v2093 = vadd.f32 %v2092, %v2039
    %v2094 = vadd.f32 %v2093, %v2043
    %v2095 = vadd.f32 %v2094, %v2047
    %v2096 = vadd.f32 %v2095, %v2051
    %v2097 = vadd.f32 %v2096, %v2055
    %v2098 = vadd.f32 %v2097, %v2059
    %v2099 = vadd.f32 %v2098, %v2063
    %v2100 = vadd.f32 %v2099, %v2067
    %v2101 = vadd.f32 %v2100, %v2071
    %v2102 = vadd.f32 %v2101, %v2075
    %v2103 = vadd.f32 %v2102, %v2079
    %v2104 = vadd.f32 %v2103, %v2083
    %v2105 = vadd.f32 %v2104, %v2087
    %v2106 = vrot.slane %v2105, 4
    %v2107 = vadd.f32 %v2105, %v2106
    %v2108 = vrot.slane %v2107, 2
    %v2109 = vadd.f32 %v2107, %v2108
    %v2110 = vrot.slane %v2109, 1
    %v2111 = vadd.f32 %v2109, %v2110
    %v2112 = vadd.f32 %v2028, %v2032
    %v2113 = vadd.f32 %v2112, %v2036
    %v2114 = vadd.f32 %v2113, %v2040
    %v2115 = vadd.f32 %v2114, %v2044
    %v2116 = vadd.f32 %v2115, %v2048
    %v2117 = vadd.f32 %v2116, %v2052
    %v2118 = vadd.f32 %v2117, %v2056
    %v2119 = vadd.f32 %v2118, %v2060
    %v2120 = vadd.f32 %v2119, %v2064
    %v2121 = vadd.f32 %v2120, %v2068
    %v2122 = vadd.f32 %v2121, %v2072
    %v2123 = vadd.f32 %v2122, %v2076
    %v2124 = vadd.f32 %v2123, %v2080
    %v2125 = vadd.f32 %v2124, %v2084
    %v2126 = vadd.f32 %v2125, %v2088
    %v2127 = vrot.slane %v2126, 4
    %v2128 = vadd.f32 %v2126, %v2127
    %v2129 = vrot.slane %v2128, 2
    %v2130 = vadd.f32 %v2128, %v2129
    %v2131 = vrot.slane %v2130, 1
    %v2132 = vadd.f32 %v2130, %v2131
    %v2133 = vadd.f32 %v2029, %v2033
    %v2134 = vadd.f32 %v2133, %v2037
    %v2135 = vadd.f32 %v2134, %v2041
    %v2136 = vadd.f32 %v2135, %v2045
    %v2137 = vadd.f32 %v2136, %v2049
    %v2138 = vadd.f32 %v2137, %v2053
    %v2139 = vadd.f32 %v2138, %v2057
    %v2140 = vadd.f32 %v2139, %v2061
    %v2141 = vadd.f32 %v2140, %v2065
    %v2142 = vadd.f32 %v2141, %v2069
    %v2143 = vadd.f32 %v2142, %v2073
    %v2144 = vadd.f32 %v2143, %v2077
    %v2145 = vadd.f32 %v2144, %v2081
    %v2146 = vadd.f32 %v2145, %v2085
    %v2147 = vadd.f32 %v2146, %v2089
    %v2148 = vrot.slane %v2147, 4
    %v2149 = vadd.f32 %v2147, %v2148
    %v2150 = vrot.slane %v2149, 2
    %v2151 = vadd.f32 %v2149, %v2150
    %v2152 = vrot.slane %v2151, 1
    %v2153 = vadd.f32 %v2151, %v2152
    %v2154 = vadd.f32 %v2030, %v2034
    %v2155 = vadd.f32 %v2154, %v2038
    %v2156 = vadd.f32 %v2155, %v2042
    %v2157 = vadd.f32 %v2156, %v2046
    %v2158 = vadd.f32 %v2157, %v2050
    %v2159 = vadd.f32 %v2158, %v2054
    %v2160 = vadd.f32 %v2159, %v2058
    %v2161 = vadd.f32 %v2160, %v2062
    %v2162 = vadd.f32 %v2161, %v2066
    %v2163 = vadd.f32 %v2162, %v2070
    %v2164 = vadd.f32 %v2163, %v2074
    %v2165 = vadd.f32 %v2164, %v2078
    %v2166 = vadd.f32 %v2165, %v2082
    %v2167 = vadd.f32 %v2166, %v2086
    %v2168 = vadd.f32 %v2167, %v2090
    %v2169 = vrot.slane %v2168, 4
    %v2170 = vadd.f32 %v2168, %v2169
    %v2171 = vrot.slane %v2170, 2
    %v2172 = vadd.f32 %v2170, %v2171
    %v2173 = vrot.slane %v2172, 1
    %v2174 = vadd.f32 %v2172, %v2173
    %v2175 = vmul.f32 %v2111, 0.0078125
    %v2176 = vmul.f32 %v2132, 0.0078125
    %v2177 = vmul.f32 %v2153, 0.0078125
    %v2178 = vmul.f32 %v2174, 0.0078125
    %v2179 = vmul.f32 %v2023, %v2023
    %v2180 = vmul.f32 %v2024, %v2024
    %v2181 = vmul.f32 %v2025, %v2025
    %v2182 = vmul.f32 %v2026, %v2026
    %v2183 = vsub.f32 %v2175, %v2179
    %v2184 = vsub.f32 %v2176, %v2180
    %v2185 = vsub.f32 %v2177, %v2181
    %v2186 = vsub.f32 %v2178, %v2182
    %v2187 = vmax.f32 %v2183, 0.0
    %v2188 = vmax.f32 %v2184, 0.0
    %v2189 = vmax.f32 %v2185, 0.0
    %v2190 = vmax.f32 %v2186, 0.0
    %v2191 = vadd.f32 %v2187, 1e-05
    %v2192 = vadd.f32 %v2188, 1e-05
    %v2193 = vadd.f32 %v2189, 1e-05
    %v2194 = vadd.f32 %v2190, 1e-05
    %v2195 = vrsqrt.pop %v2191
    %v2196 = vrsqrt.pop %v2192
    %v2197 = vrsqrt.pop %v2193
    %v2198 = vrsqrt.pop %v2194
    %v2203 = vcombine.low %v2195, %v2196
    %v2204 = vcombine.low %v2197, %v2198
    %v2206 = vunpack.c.l.s4 1966171168
    %v2207 = vunpack.c.0.s8 %v2206
    %v2208 = vlaneseq
    %v2209 = vshrl.u32 %v2208, 7
    %v2210 = vsub.s32 %v2207, %v2209
    %v2211 = vrot.slane %v2203, %v2210
    %v2213 = vunpack.c.l.s4 1966171168
    %v2214 = vunpack.c.0.s8 %v2213
    %v2215 = vlaneseq
    %v2216 = vshrl.u32 %v2215, 7
    %v2217 = vsub.s32 %v2214, %v2216
    %v2218 = vrot.slane %v2204, %v2217
    %v2219 = vcombine.low %v2211, %v2218
    %v2221 = vunpack.c.l.s4 1966171168
    %v2222 = vunpack.c.0.s8 %v2221
    %v2223 = vlaneseq
    %v2224 = vshrl.u32 %v2223, 7
    %v2225 = vsub.s32 %v2222, %v2224
    %v2226 = vrot.slane %v2219, %v2225
    %v2228 = vmul.f32 %v1498, %v2226
    %v2230 = vlaneseq
    %v2231 = vshrl.u32 %v2230, 7
    %v2232 = vsub.s32 0, %v2231
    %v2233 = vrot.slane %v2228, %v2232
    %v2234 = vlaneseq
    %v2235 = vshrl.u32 %v2234, 7
    %v2236 = vsub.s32 1, %v2235
    %v2237 = vrot.slane %v2228, %v2236
    %v2238 = vlaneseq
    %v2239 = vshrl.u32 %v2238, 7
    %v2240 = vsub.s32 2, %v2239
    %v2241 = vrot.slane %v2228, %v2240
    %v2242 = vlaneseq
    %v2243 = vshrl.u32 %v2242, 7
    %v2244 = vsub.s32 3, %v2243
    %v2245 = vrot.slane %v2228, %v2244
    %v2250 = vmul.f32 %v2023, %v2233
    %v2251 = vmul.f32 %v2024, %v2237
    %v2252 = vmul.f32 %v2025, %v2241
    %v2253 = vmul.f32 %v2026, %v2245
    %v2258 = vcombine.low %v2250, %v2251
    %v2259 = vcombine.low %v2252, %v2253
    %v2261 = vunpack.c.l.s4 1966171168
    %v2262 = vunpack.c.0.s8 %v2261
    %v2263 = vlaneseq
    %v2264 = vshrl.u32 %v2263, 7
    %v2265 = vsub.s32 %v2262, %v2264
    %v2266 = vrot.slane %v2258, %v2265
    %v2268 = vunpack.c.l.s4 1966171168
    %v2269 = vunpack.c.0.s8 %v2268
    %v2270 = vlaneseq
    %v2271 = vshrl.u32 %v2270, 7
    %v2272 = vsub.s32 %v2269, %v2271
    %v2273 = vrot.slane %v2259, %v2272
    %v2274 = vcombine.low %v2266, %v2273
    %v2276 = vunpack.c.l.s4 1966171168
    %v2277 = vunpack.c.0.s8 %v2276
    %v2278 = vlaneseq
    %v2279 = vshrl.u32 %v2278, 7
    %v2280 = vsub.s32 %v2277, %v2279
    %v2281 = vrot.slane %v2274, %v2280
    %v2283 = vsub.f32 %v1499, %v2281
    %v2284 = vmul.f32 %v1875, %v2233
    %v2285 = vmul.f32 %v1876, %v2237
    %v2286 = vmul.f32 %v1877, %v2241
    %v2287 = vmul.f32 %v1878, %v2245
    %v2288 = vmul.f32 %v1879, %v2233
    %v2289 = vmul.f32 %v1880, %v2237
    %v2290 = vmul.f32 %v1881, %v2241
    %v2291 = vmul.f32 %v1882, %v2245
    %v2292 = vmul.f32 %v1883, %v2233
    %v2293 = vmul.f32 %v1884, %v2237
    %v2294 = vmul.f32 %v1885, %v2241
    %v2295 = vmul.f32 %v1886, %v2245
    %v2296 = vmul.f32 %v1887, %v2233
    %v2297 = vmul.f32 %v1888, %v2237
    %v2298 = vmul.f32 %v1889, %v2241
    %v2299 = vmul.f32 %v1890, %v2245
    %v2300 = vmul.f32 %v1891, %v2233
    %v2301 = vmul.f32 %v1892, %v2237
    %v2302 = vmul.f32 %v1893, %v2241
    %v2303 = vmul.f32 %v1894, %v2245
    %v2304 = vmul.f32 %v1895, %v2233
    %v2305 = vmul.f32 %v1896, %v2237
    %v2306 = vmul.f32 %v1897, %v2241
    %v2307 = vmul.f32 %v1898, %v2245
    %v2308 = vmul.f32 %v1899, %v2233
    %v2309 = vmul.f32 %v1900, %v2237
    %v2310 = vmul.f32 %v1901, %v2241
    %v2311 = vmul.f32 %v1902, %v2245
    %v2312 = vmul.f32 %v1903, %v2233
    %v2313 = vmul.f32 %v1904, %v2237
    %v2314 = vmul.f32 %v1905, %v2241
    %v2315 = vmul.f32 %v1906, %v2245
    %v2316 = vmul.f32 %v1907, %v2233
    %v2317 = vmul.f32 %v1908, %v2237
    %v2318 = vmul.f32 %v1909, %v2241
    %v2319 = vmul.f32 %v1910, %v2245
    %v2320 = vmul.f32 %v1911, %v2233
    %v2321 = vmul.f32 %v1912, %v2237
    %v2322 = vmul.f32 %v1913, %v2241
    %v2323 = vmul.f32 %v1914, %v2245
    %v2324 = vmul.f32 %v1915, %v2233
    %v2325 = vmul.f32 %v1916, %v2237
    %v2326 = vmul.f32 %v1917, %v2241
    %v2327 = vmul.f32 %v1918, %v2245
    %v2328 = vmul.f32 %v1919, %v2233
    %v2329 = vmul.f32 %v1920, %v2237
    %v2330 = vmul.f32 %v1921, %v2241
    %v2331 = vmul.f32 %v1922, %v2245
    %v2332 = vmul.f32 %v1923, %v2233
    %v2333 = vmul.f32 %v1924, %v2237
    %v2334 = vmul.f32 %v1925, %v2241
    %v2335 = vmul.f32 %v1926, %v2245
    %v2336 = vmul.f32 %v1927, %v2233
    %v2337 = vmul.f32 %v1928, %v2237
    %v2338 = vmul.f32 %v1929, %v2241
    %v2339 = vmul.f32 %v1930, %v2245
    %v2340 = vmul.f32 %v1931, %v2233
    %v2341 = vmul.f32 %v1932, %v2237
    %v2342 = vmul.f32 %v1933, %v2241
    %v2343 = vmul.f32 %v1934, %v2245
    %v2344 = vmul.f32 %v1935, %v2233
    %v2345 = vmul.f32 %v1936, %v2237
    %v2346 = vmul.f32 %v1937, %v2241
    %v2347 = vmul.f32 %v1938, %v2245
    %v2349 = vlaneseq
    %v2350 = vshrl.u32 %v2349, 7
    %v2351 = vsub.s32 0, %v2350
    %v2352 = vrot.slane %v2283, %v2351
    %v2353 = vlaneseq
    %v2354 = vshrl.u32 %v2353, 7
    %v2355 = vsub.s32 1, %v2354
    %v2356 = vrot.slane %v2283, %v2355
    %v2357 = vlaneseq
    %v2358 = vshrl.u32 %v2357, 7
    %v2359 = vsub.s32 2, %v2358
    %v2360 = vrot.slane %v2283, %v2359
    %v2361 = vlaneseq
    %v2362 = vshrl.u32 %v2361, 7
    %v2363 = vsub.s32 3, %v2362
    %v2364 = vrot.slane %v2283, %v2363
    %v2369 = vadd.f32 %v2284, %v2352
    %v2370 = vadd.f32 %v2285, %v2356
    %v2371 = vadd.f32 %v2286, %v2360
    %v2372 = vadd.f32 %v2287, %v2364
    %v2373 = vadd.f32 %v2288, %v2352
    %v2374 = vadd.f32 %v2289, %v2356
    %v2375 = vadd.f32 %v2290, %v2360
    %v2376 = vadd.f32 %v2291, %v2364
    %v2377 = vadd.f32 %v2292, %v2352
    %v2378 = vadd.f32 %v2293, %v2356
    %v2379 = vadd.f32 %v2294, %v2360
    %v2380 = vadd.f32 %v2295, %v2364
    %v2381 = vadd.f32 %v2296, %v2352
    %v2382 = vadd.f32 %v2297, %v2356
    %v2383 = vadd.f32 %v2298, %v2360
    %v2384 = vadd.f32 %v2299, %v2364
    %v2385 = vadd.f32 %v2300, %v2352
    %v2386 = vadd.f32 %v2301, %v2356
    %v2387 = vadd.f32 %v2302, %v2360
    %v2388 = vadd.f32 %v2303, %v2364
    %v2389 = vadd.f32 %v2304, %v2352
    %v2390 = vadd.f32 %v2305, %v2356
    %v2391 = vadd.f32 %v2306, %v2360
    %v2392 = vadd.f32 %v2307, %v2364
    %v2393 = vadd.f32 %v2308, %v2352
    %v2394 = vadd.f32 %v2309, %v2356
    %v2395 = vadd.f32 %v2310, %v2360
    %v2396 = vadd.f32 %v2311, %v2364
    %v2397 = vadd.f32 %v2312, %v2352
    %v2398 = vadd.f32 %v2313, %v2356
    %v2399 = vadd.f32 %v2314, %v2360
    %v2400 = vadd.f32 %v2315, %v2364
    %v2401 = vadd.f32 %v2316, %v2352
    %v2402 = vadd.f32 %v2317, %v2356
    %v2403 = vadd.f32 %v2318, %v2360
    %v2404 = vadd.f32 %v2319, %v2364
    %v2405 = vadd.f32 %v2320, %v2352
    %v2406 = vadd.f32 %v2321, %v2356
    %v2407 = vadd.f32 %v2322, %v2360
    %v2408 = vadd.f32 %v2323, %v2364
    %v2409 = vadd.f32 %v2324, %v2352
    %v2410 = vadd.f32 %v2325, %v2356
    %v2411 = vadd.f32 %v2326, %v2360
    %v2412 = vadd.f32 %v2327, %v2364
    %v2413 = vadd.f32 %v2328, %v2352
    %v2414 = vadd.f32 %v2329, %v2356
    %v2415 = vadd.f32 %v2330, %v2360
    %v2416 = vadd.f32 %v2331, %v2364
    %v2417 = vadd.f32 %v2332, %v2352
    %v2418 = vadd.f32 %v2333, %v2356
    %v2419 = vadd.f32 %v2334, %v2360
    %v2420 = vadd.f32 %v2335, %v2364
    %v2421 = vadd.f32 %v2336, %v2352
    %v2422 = vadd.f32 %v2337, %v2356
    %v2423 = vadd.f32 %v2338, %v2360
    %v2424 = vadd.f32 %v2339, %v2364
    %v2425 = vadd.f32 %v2340, %v2352
    %v2426 = vadd.f32 %v2341, %v2356
    %v2427 = vadd.f32 %v2342, %v2360
    %v2428 = vadd.f32 %v2343, %v2364
    %v2429 = vadd.f32 %v2344, %v2352
    %v2430 = vadd.f32 %v2345, %v2356
    %v2431 = vadd.f32 %v2346, %v2360
    %v2432 = vadd.f32 %v2347, %v2364
    %v2433 = vpack.c.bf16 %v2373, %v2369
    %v2434 = vpack.c.bf16 %v2374, %v2370
    %v2435 = vpack.c.bf16 %v2375, %v2371
    %v2436 = vpack.c.bf16 %v2376, %v2372
    %v2437 = vpack.c.bf16 %v2381, %v2377
    %v2438 = vpack.c.bf16 %v2382, %v2378
    %v2439 = vpack.c.bf16 %v2383, %v2379
    %v2440 = vpack.c.bf16 %v2384, %v2380
    %v2441 = vpack.c.bf16 %v2389, %v2385
    %v2442 = vpack.c.bf16 %v2390, %v2386
    %v2443 = vpack.c.bf16 %v2391, %v2387
    %v2444 = vpack.c.bf16 %v2392, %v2388
    %v2445 = vpack.c.bf16 %v2397, %v2393
    %v2446 = vpack.c.bf16 %v2398, %v2394
    %v2447 = vpack.c.bf16 %v2399, %v2395
    %v2448 = vpack.c.bf16 %v2400, %v2396
    %v2449 = vpack.c.bf16 %v2405, %v2401
    %v2450 = vpack.c.bf16 %v2406, %v2402
    %v2451 = vpack.c.bf16 %v2407, %v2403
    %v2452 = vpack.c.bf16 %v2408, %v2404
    %v2453 = vpack.c.bf16 %v2413, %v2409
    %v2454 = vpack.c.bf16 %v2414, %v2410
    %v2455 = vpack.c.bf16 %v2415, %v2411
    %v2456 = vpack.c.bf16 %v2416, %v2412
    %v2457 = vpack.c.bf16 %v2421, %v2417
    %v2458 = vpack.c.bf16 %v2422, %v2418
    %v2459 = vpack.c.bf16 %v2423, %v2419
    %v2460 = vpack.c.bf16 %v2424, %v2420
    %v2461 = vpack.c.bf16 %v2429, %v2425
    %v2462 = vpack.c.bf16 %v2430, %v2426
    %v2463 = vpack.c.bf16 %v2431, %v2427
    %v2464 = vpack.c.bf16 %v2432, %v2428
    %s2465 = smul.u32 4, 64
    %s2466 = smul.u32 %s2465, 1
    %s2467 = sshll.u32 %s2466, 4
    %2468 = dma.done %s194, %s2467
    %v2469 = vld [vmem:[#allocation3] sm:$0xff]
    %v2470 = vld [vmem:[#allocation3 + $0x8] sm:$0xff]
    %v2471 = vld [vmem:[#allocation3 + $0x10] sm:$0xff]
    %v2472 = vld [vmem:[#allocation3 + $0x18] sm:$0xff]
    %v2473 = vld [vmem:[#allocation3 + $0x20] sm:$0xff]
    %v2474 = vld [vmem:[#allocation3 + $0x28] sm:$0xff]
    %v2475 = vld [vmem:[#allocation3 + $0x30] sm:$0xff]
    %v2476 = vld [vmem:[#allocation3 + $0x38] sm:$0xff]
    %v2477 = vld [vmem:[#allocation3 + $0x40] sm:$0xff]
    %v2478 = vld [vmem:[#allocation3 + $0x48] sm:$0xff]
    %v2479 = vld [vmem:[#allocation3 + $0x50] sm:$0xff]
    %v2480 = vld [vmem:[#allocation3 + $0x58] sm:$0xff]
    %v2481 = vld [vmem:[#allocation3 + $0x60] sm:$0xff]
    %v2482 = vld [vmem:[#allocation3 + $0x68] sm:$0xff]
    %v2483 = vld [vmem:[#allocation3 + $0x70] sm:$0xff]
    %v2484 = vld [vmem:[#allocation3 + $0x78] sm:$0xff]
    %v2485 = vld [vmem:[#allocation3 + $0x80] sm:$0xff]
    %v2486 = vld [vmem:[#allocation3 + $0x88] sm:$0xff]
    %v2487 = vld [vmem:[#allocation3 + $0x90] sm:$0xff]
    %v2488 = vld [vmem:[#allocation3 + $0x98] sm:$0xff]
    %v2489 = vld [vmem:[#allocation3 + $0xa0] sm:$0xff]
    %v2490 = vld [vmem:[#allocation3 + $0xa8] sm:$0xff]
    %v2491 = vld [vmem:[#allocation3 + $0xb0] sm:$0xff]
    %v2492 = vld [vmem:[#allocation3 + $0xb8] sm:$0xff]
    %v2493 = vld [vmem:[#allocation3 + $0xc0] sm:$0xff]
    %v2494 = vld [vmem:[#allocation3 + $0xc8] sm:$0xff]
    %v2495 = vld [vmem:[#allocation3 + $0xd0] sm:$0xff]
    %v2496 = vld [vmem:[#allocation3 + $0xd8] sm:$0xff]
    %v2497 = vld [vmem:[#allocation3 + $0xe0] sm:$0xff]
    %v2498 = vld [vmem:[#allocation3 + $0xe8] sm:$0xff]
    %v2499 = vld [vmem:[#allocation3 + $0xf0] sm:$0xff]
    %v2500 = vld [vmem:[#allocation3 + $0xf8] sm:$0xff]
    %v2501 = vld [vmem:[#allocation18] sm:$0x1]
    %v2503 = vlaneseq
    %v2504 = vshrl.u32 %v2503, 7
    %v2505 = vsub.s32 0, %v2504
    %v2506 = vrot.slane %v2501, %v2505
    %2508 = vmatprep.subr.bf16.mxu0 0
    %2509 = vmatpush1.bf16.msra.mxu0 %v2469
    %2510 = vmatprep.subr.bf16.mxu0 0
    %2511 = vmatpush1.bf16.msra.mxu0 %v2470
    %2512 = vmatprep.subr.bf16.mxu0 0
    %2513 = vmatpush1.bf16.msra.mxu0 %v2471
    %2514 = vmatprep.subr.bf16.mxu0 0
    %2515 = vmatpush1.bf16.msra.mxu0 %v2472
    %2516 = vmatprep.subr.bf16.mxu0 0
    %2517 = vmatpush1.bf16.msra.mxu0 %v2473
    %2518 = vmatprep.subr.bf16.mxu0 0
    %2519 = vmatpush1.bf16.msra.mxu0 %v2474
    %2520 = vmatprep.subr.bf16.mxu0 0
    %2521 = vmatpush1.bf16.msra.mxu0 %v2475
    %2522 = vmatprep.subr.bf16.mxu0 0
    %2523 = vmatpush1.bf16.msra.mxu0 %v2476
    %2524 = vmatprep.subr.bf16.mxu0 0
    %2525 = vmatpush1.bf16.msra.mxu0 %v2477
    %2526 = vmatprep.subr.bf16.mxu0 0
    %2527 = vmatpush1.bf16.msra.mxu0 %v2478
    %2528 = vmatprep.subr.bf16.mxu0 0
    %2529 = vmatpush1.bf16.msra.mxu0 %v2479
    %2530 = vmatprep.subr.bf16.mxu0 0
    %2531 = vmatpush1.bf16.msra.mxu0 %v2480
    %2532 = vmatprep.subr.bf16.mxu0 0
    %2533 = vmatpush1.bf16.msra.mxu0 %v2481
    %2534 = vmatprep.subr.bf16.mxu0 0
    %2535 = vmatpush1.bf16.msra.mxu0 %v2482
    %2536 = vmatprep.subr.bf16.mxu0 0
    %2537 = vmatpush1.bf16.msra.mxu0 %v2483
    %2538 = vmatprep.subr.bf16.mxu0 0
    %2539 = vmatpush1.bf16.msra.mxu0 %v2484
    %2540 = vmatprep.mubr.bf16.mxu0 %v2434
    %2541 = vmatmul.mubr.bf16.gmra.mrb[0].mxu0 %v2433
    %v2542 = vpop.f32.mrb[0].mxu0
    %v2543 = vadd.f32 %v2506, %v2542
    %v2544 = vpop.f32.mrb[0].mxu0
    %v2545 = vpop.f32.mrb[0].mxu0
    %v2546 = vadd.f32 %v2506, %v2545
    %v2547 = vpop.f32.mrb[0].mxu0
    %2548 = vmatprep.mubr.bf16.mxu0 %v2438
    %2549 = vmatmul.mubr.bf16.gmra.mrb[0].mxu0 %v2437
    %v2550 = vpop.f32.mrb[0].mxu0
    %v2551 = vadd.f32 %v2506, %v2550
    %v2552 = vpop.f32.mrb[0].mxu0
    %v2553 = vpop.f32.mrb[0].mxu0
    %v2554 = vadd.f32 %v2506, %v2553
    %v2555 = vpop.f32.mrb[0].mxu0
    %2556 = vmatprep.mubr.bf16.mxu0 %v2442
    %2557 = vmatmul.mubr.bf16.gmra.mrb[0].mxu0 %v2441
    %v2558 = vpop.f32.mrb[0].mxu0
    %v2559 = vadd.f32 %v2506, %v2558
    %v2560 = vpop.f32.mrb[0].mxu0
    %v2561 = vpop.f32.mrb[0].mxu0
    %v2562 = vadd.f32 %v2506, %v2561
    %v2563 = vpop.f32.mrb[0].mxu0
    %2564 = vmatprep.mubr.bf16.mxu0 %v2446
    %2565 = vmatmul.mubr.bf16.gmra.mrb[0].mxu0 %v2445
    %v2566 = vpop.f32.mrb[0].mxu0
    %v2567 = vadd.f32 %v2506, %v2566
    %v2568 = vpop.f32.mrb[0].mxu0
    %v2569 = vpop.f32.mrb[0].mxu0
    %v2570 = vadd.f32 %v2506, %v2569
    %v2571 = vpop.f32.mrb[0].mxu0
    %2572 = vmatprep.mubr.bf16.mxu0 %v2450
    %2573 = vmatmul.mubr.bf16.gmra.mrb[0].mxu0 %v2449
    %v2574 = vpop.f32.mrb[0].mxu0
    %v2575 = vadd.f32 %v2506, %v2574
    %v2576 = vpop.f32.mrb[0].mxu0
    %v2577 = vpop.f32.mrb[0].mxu0
    %v2578 = vadd.f32 %v2506, %v2577
    %v2579 = vpop.f32.mrb[0].mxu0
    %2580 = vmatprep.mubr.bf16.mxu0 %v2454
    %2581 = vmatmul.mubr.bf16.gmra.mrb[0].mxu0 %v2453
    %v2582 = vpop.f32.mrb[0].mxu0
    %v2583 = vadd.f32 %v2506, %v2582
    %v2584 = vpop.f32.mrb[0].mxu0
    %v2585 = vpop.f32.mrb[0].mxu0
    %v2586 = vadd.f32 %v2506, %v2585
    %v2587 = vpop.f32.mrb[0].mxu0
    %2588 = vmatprep.mubr.bf16.mxu0 %v2458
    %2589 = vmatmul.mubr.bf16.gmra.mrb[0].mxu0 %v2457
    %v2590 = vpop.f32.mrb[0].mxu0
    %v2591 = vadd.f32 %v2506, %v2590
    %v2592 = vpop.f32.mrb[0].mxu0
    %v2593 = vpop.f32.mrb[0].mxu0
    %v2594 = vadd.f32 %v2506, %v2593
    %v2595 = vpop.f32.mrb[0].mxu0
    %2596 = vmatprep.mubr.bf16.mxu0 %v2462
    %2597 = vmatmul.mubr.bf16.gmra.mrb[0].mxu0 %v2461
    %v2598 = vpop.f32.mrb[0].mxu0
    %v2599 = vadd.f32 %v2506, %v2598
    %v2600 = vpop.f32.mrb[0].mxu0
    %v2601 = vpop.f32.mrb[0].mxu0
    %v2602 = vadd.f32 %v2506, %v2601
    %v2603 = vpop.f32.mrb[0].mxu0
    %2604 = vdwg.mxu0
    %2605 = vmatprep.subr.bf16.mxu0 0
    %2606 = vmatpush1.bf16.msra.mxu0 %v2485
    %2607 = vmatprep.subr.bf16.mxu0 0
    %2608 = vmatpush1.bf16.msra.mxu0 %v2486
    %2609 = vmatprep.subr.bf16.mxu0 0
    %2610 = vmatpush1.bf16.msra.mxu0 %v2487
    %2611 = vmatprep.subr.bf16.mxu0 0
    %2612 = vmatpush1.bf16.msra.mxu0 %v2488
    %2613 = vmatprep.subr.bf16.mxu0 0
    %2614 = vmatpush1.bf16.msra.mxu0 %v2489
    %2615 = vmatprep.subr.bf16.mxu0 0
    %2616 = vmatpush1.bf16.msra.mxu0 %v2490
    %2617 = vmatprep.subr.bf16.mxu0 0
    %2618 = vmatpush1.bf16.msra.mxu0 %v2491
    %2619 = vmatprep.subr.bf16.mxu0 0
    %2620 = vmatpush1.bf16.msra.mxu0 %v2492
    %2621 = vmatprep.subr.bf16.mxu0 0
    %2622 = vmatpush1.bf16.msra.mxu0 %v2493
    %2623 = vmatprep.subr.bf16.mxu0 0
    %2624 = vmatpush1.bf16.msra.mxu0 %v2494
    %2625 = vmatprep.subr.bf16.mxu0 0
    %2626 = vmatpush1.bf16.msra.mxu0 %v2495
    %2627 = vmatprep.subr.bf16.mxu0 0
    %2628 = vmatpush1.bf16.msra.mxu0 %v2496
    %2629 = vmatprep.subr.bf16.mxu0 0
    %2630 = vmatpush1.bf16.msra.mxu0 %v2497
    %2631 = vmatprep.subr.bf16.mxu0 0
    %2632 = vmatpush1.bf16.msra.mxu0 %v2498
    %2633 = vmatprep.subr.bf16.mxu0 0
    %2634 = vmatpush1.bf16.msra.mxu0 %v2499
    %2635 = vmatprep.subr.bf16.mxu0 0
    %2636 = vmatpush1.bf16.msra.mxu0 %v2500
    %2637 = vmatprep.mubr.bf16.mxu0 %v2436
    %2638 = vmatmul.mubr.bf16.gmra.mrb[0].mxu0 %v2435
    %v2639 = vpop.f32.mrb[0].mxu0
    %v2640 = vadd.f32 %v2543, %v2639
    %v2641 = vpop.f32.mrb[0].mxu0
    %v2642 = vpop.f32.mrb[0].mxu0
    %v2643 = vadd.f32 %v2546, %v2642
    %v2644 = vpop.f32.mrb[0].mxu0
    %2645 = vmatprep.mubr.bf16.mxu0 %v2440
    %2646 = vmatmul.mubr.bf16.gmra.mrb[0].mxu0 %v2439
    %v2647 = vpop.f32.mrb[0].mxu0
    %v2648 = vadd.f32 %v2551, %v2647
    %v2649 = vpop.f32.mrb[0].mxu0
    %v2650 = vpop.f32.mrb[0].mxu0
    %v2651 = vadd.f32 %v2554, %v2650
    %v2652 = vpop.f32.mrb[0].mxu0
    %2653 = vmatprep.mubr.bf16.mxu0 %v2444
    %2654 = vmatmul.mubr.bf16.gmra.mrb[0].mxu0 %v2443
    %v2655 = vpop.f32.mrb[0].mxu0
    %v2656 = vadd.f32 %v2559, %v2655
    %v2657 = vpop.f32.mrb[0].mxu0
    %v2658 = vpop.f32.mrb[0].mxu0
    %v2659 = vadd.f32 %v2562, %v2658
    %v2660 = vpop.f32.mrb[0].mxu0
    %2661 = vmatprep.mubr.bf16.mxu0 %v2448
    %2662 = vmatmul.mubr.bf16.gmra.mrb[0].mxu0 %v2447
    %v2663 = vpop.f32.mrb[0].mxu0
    %v2664 = vadd.f32 %v2567, %v2663
    %v2665 = vpop.f32.mrb[0].mxu0
    %v2666 = vpop.f32.mrb[0].mxu0
    %v2667 = vadd.f32 %v2570, %v2666
    %v2668 = vpop.f32.mrb[0].mxu0
    %2669 = vmatprep.mubr.bf16.mxu0 %v2452
    %2670 = vmatmul.mubr.bf16.gmra.mrb[0].mxu0 %v2451
    %v2671 = vpop.f32.mrb[0].mxu0
    %v2672 = vadd.f32 %v2575, %v2671
    %v2673 = vpop.f32.mrb[0].mxu0
    %v2674 = vpop.f32.mrb[0].mxu0
    %v2675 = vadd.f32 %v2578, %v2674
    %v2676 = vpop.f32.mrb[0].mxu0
    %2677 = vmatprep.mubr.bf16.mxu0 %v2456
    %2678 = vmatmul.mubr.bf16.gmra.mrb[0].mxu0 %v2455
    %v2679 = vpop.f32.mrb[0].mxu0
    %v2680 = vadd.f32 %v2583, %v2679
    %v2681 = vpop.f32.mrb[0].mxu0
    %v2682 = vpop.f32.mrb[0].mxu0
    %v2683 = vadd.f32 %v2586, %v2682
    %v2684 = vpop.f32.mrb[0].mxu0
    %2685 = vmatprep.mubr.bf16.mxu0 %v2460
    %2686 = vmatmul.mubr.bf16.gmra.mrb[0].mxu0 %v2459
    %v2687 = vpop.f32.mrb[0].mxu0
    %v2688 = vadd.f32 %v2591, %v2687
    %v2689 = vpop.f32.mrb[0].mxu0
    %v2690 = vpop.f32.mrb[0].mxu0
    %v2691 = vadd.f32 %v2594, %v2690
    %v2692 = vpop.f32.mrb[0].mxu0
    %2693 = vmatprep.mubr.bf16.mxu0 %v2464
    %2694 = vmatmul.mubr.bf16.gmra.mrb[0].mxu0 %v2463
    %v2695 = vpop.f32.mrb[0].mxu0
    %v2696 = vadd.f32 %v2599, %v2695
    %v2697 = vpop.f32.mrb[0].mxu0
    %v2698 = vpop.f32.mrb[0].mxu0
    %v2699 = vadd.f32 %v2602, %v2698
    %v2700 = vpop.f32.mrb[0].mxu0
    %2701 = vdwg.mxu0
    %v2702 = vtanh.pop %v2640
    %v2703 = vtanh.pop %v2643
    %v2704 = vtanh.pop %v2648
    %v2705 = vtanh.pop %v2651
    %v2706 = vtanh.pop %v2656
    %v2707 = vtanh.pop %v2659
    %v2708 = vtanh.pop %v2664
    %v2709 = vtanh.pop %v2667
    %v2710 = vtanh.pop %v2672
    %v2711 = vtanh.pop %v2675
    %v2712 = vtanh.pop %v2680
    %v2713 = vtanh.pop %v2683
    %v2714 = vtanh.pop %v2688
    %v2715 = vtanh.pop %v2691
    %v2716 = vtanh.pop %v2696
    %v2717 = vtanh.pop %v2699
    %2718 = vst [vmem:[%s17] sm:$0xff] %v2702
    %2719 = vst [vmem:[%s17 + $0x8] sm:$0xff] %v2703
    %2720 = vst [vmem:[%s17 + $0x10] sm:$0xff] %v2704
    %2721 = vst [vmem:[%s17 + $0x18] sm:$0xff] %v2705
    %2722 = vst [vmem:[%s17 + $0x20] sm:$0xff] %v2706
    %2723 = vst [vmem:[%s17 + $0x28] sm:$0xff] %v2707
    %2724 = vst [vmem:[%s17 + $0x30] sm:$0xff] %v2708
    %2725 = vst [vmem:[%s17 + $0x38] sm:$0xff] %v2709
    %2726 = vst [vmem:[%s17 + $0x40] sm:$0xff] %v2710
    %2727 = vst [vmem:[%s17 + $0x48] sm:$0xff] %v2711
    %2728 = vst [vmem:[%s17 + $0x50] sm:$0xff] %v2712
    %2729 = vst [vmem:[%s17 + $0x58] sm:$0xff] %v2713
    %2730 = vst [vmem:[%s17 + $0x60] sm:$0xff] %v2714
    %2731 = vst [vmem:[%s17 + $0x68] sm:$0xff] %v2715
    %2732 = vst [vmem:[%s17 + $0x70] sm:$0xff] %v2716
    %2733 = vst [vmem:[%s17 + $0x78] sm:$0xff] %v2717
    // Predicated region
    $region132: #{generator_forward.1} parent=1 // pred_check
      _
    $region133: #{generator_forward.1} parent=1 // pred_check_branch
      %2735 = sbr.rel (0) target = $region135
    $region134: #{generator_forward.1} parent=1 // pred_region
      _
    $region135: #{generator_forward.1} parent=1 // pred_fallthru
      _
    // Predicated region
    $region136: #{generator_forward.1} parent=1 // pred_check
      _
    $region137: #{generator_forward.1} parent=1 // pred_check_branch
      %2737 = sbr.rel (0) target = $region139
    $region138: #{generator_forward.1} parent=1 // pred_region
      _
    $region139: #{generator_forward.1} parent=1 // pred_fallthru
      _
    %2738 = vsyncpa [#allocation6], 1
    %2739 = vsyncpa [#allocation8], 1
    %2740 = vsyncpa [#allocation11], 1
    %2741 = vsyncpa [#allocation14], 1
    %2742 = vsyncpa [#allocation17], 1
  %2743 = vsyncmov [#allocation4]
  %s2744 = vpop.sfrf %2743
  %p2745 = scmp.eq.s32.totalorder %s2744, 0
  %p2746 = pneg %p2745
  %2748 = shalt.err (%p2746)
  %s2749 = scalar_lea.sflag [#allocation4], 1
  %2750 = vsyncmov %s2749
  %s2751 = vpop.sfrf %2750
  %p2752 = scmp.eq.s32.totalorder %s2751, 0
  %p2753 = pneg %p2752
  %2755 = shalt.err (%p2753)

</llo_original>
